<compile_context>
chip_gen: v6e
topology: v6e:2x2x1
jax: 0.10.0
libtpu: 0.0.40
codegen_flags: <defaults>
</compile_context>

<pallas_src>
import functools
import math

import jax
import jax.numpy as jnp
from jax.experimental import pallas as pl
from jax.experimental.pallas import tpu as pltpu


def _largest_divisor_tile(n, target):
    t = min(n, target)
    while n % t:
        t -= 1
    return t


def _vmem_limit_bytes(working_set):
    # Explicit scoped-VMEM limit (v5e defaults to 16 MiB): 3x the per-step working set,
    # floored at 32 MiB, kept under v7x's 64 MiB physical VMEM.
    return int(min(60 * 1024 * 1024, max(32 * 1024 * 1024, 3 * working_set)))


def _qkv_proj_kernel(x_ref, wqkv_ref, bqkv_ref, q_ref, k_ref, v_ref, *, d_model):
    """One token tile: (tm, D) bf16 -> q/k/v (tm, D) bf16 each."""
    D = d_model
    # Single fused MXU matmul, f32 accumulation, f32 bias add, one bf16 cast.
    qkv = (jnp.dot(x_ref[...], wqkv_ref[...],
                   preferred_element_type=jnp.float32)
           + bqkv_ref[...]).astype(jnp.bfloat16)            # (tm, 3D)
    # Lane-aligned slices (D is a multiple of 128 for the example shapes).
    q_ref[...] = qkv[:, :D]          # already scaled: 1/sqrt(hd) folded into wq/bq
    k_ref[...] = qkv[:, D:2 * D]
    v_ref[...] = qkv[:, 2 * D:]


def _flash_alibi_kernel(q_ref, k_ref, v_ref, wo_ref, bo_ref, o_ref,
                        m_sc, l_sc, acc_sc, *, num_heads, head_dim, kv_tile):
    """One (batch, q-tile) output block, iterated over kv tiles (online softmax)."""
    H, hd, tk = num_heads, head_dim, kv_tile
    kv = pl.program_id(2)

    @pl.when(kv == 0)
    def _():
        m_sc[...] = jnp.full(m_sc.shape, -jnp.inf, dtype=m_sc.dtype)
        l_sc[...] = jnp.zeros(l_sc.shape, dtype=l_sc.dtype)
        acc_sc[...] = jnp.zeros(acc_sc.shape, dtype=acc_sc.dtype)

    # Global key indices for this kv tile. The -slope_h*q_idx term is a per-row constant
    # and cancels under softmax, so only the key-index term is added.
    col = (jax.lax.broadcasted_iota(jnp.float32, (1, tk), 1)
           + (kv * tk).astype(jnp.float32))                  # (1, tk)

    q = q_ref[0]                                             # (tq, D) bf16 (pre-scaled)
    k = k_ref[0]                                             # (tk, D) bf16
    v = v_ref[0]                                             # (tk, D) bf16

    # Static unroll over heads: lane-aligned 128-wide slices, no transposes; the LLO
    # scheduler can overlap head h's exp/sum (EUP/VPU/XLU) with head h+1's matmuls (MXU).
    for h in range(H):
        sl = slice(h * hd, (h + 1) * hd)
        qh, kh, vh = q[:, sl], k[:, sl], v[:, sl]

        # QK^T for this head: contract on hd (no explicit transpose).
        s = jax.lax.dot_general(qh, kh, (((1,), (1,)), ((), ())),
                                preferred_element_type=jnp.float32)   # (tq, tk)

        slope = 2.0 ** (-h / H)                              # module's 2**(-h/H), h>=0
        s = s + slope * col

        m_prev = m_sc[h]                                     # (tq, 1)
        l_prev = l_sc[h]
        m_new = jnp.maximum(m_prev, jnp.max(s, axis=-1, keepdims=True))
        alpha = jnp.exp(m_prev - m_new)
        p = jnp.exp(s - m_new)                               # (tq, tk) f32
        l_sc[h] = alpha * l_prev + jnp.sum(p, axis=-1, keepdims=True)
        acc_sc[:, sl] = alpha * acc_sc[:, sl] + jnp.dot(
            p.astype(jnp.bfloat16), vh, preferred_element_type=jnp.float32)
        m_sc[h] = m_new

    @pl.when(kv == pl.num_programs(2) - 1)
    def _():
        # Normalize each head's lane slice of the (tq, D) accumulator in place.
        for h in range(H):
            sl = slice(h * hd, (h + 1) * hd)
            inv = pl.reciprocal(l_sc[h], approx=True)        # (tq, 1) on the EUP
            acc_sc[:, sl] = acc_sc[:, sl] * inv
        ctx = acc_sc[...].astype(jnp.bfloat16)               # lane-dense (tq, D)
        out = jnp.dot(ctx, wo_ref[...],
                      preferred_element_type=jnp.float32) + bo_ref[...]
        o_ref[0] = out.astype(o_ref.dtype)


def alibi_attention(x, params, *, num_heads,
                    q_tile=256, kv_tile=512, proj_tile=256):
    """x: (B, S, D) float32. params: dict of f32 projection weights/biases."""
    B, S, D = x.shape
    hd = D // num_heads
    assert hd * num_heads == D
    H = num_heads
    scale = hd ** (-0.5)

    # Fold 1/sqrt(head_dim) into the Q projection and fuse Q/K/V weights/biases.
    wqkv = jnp.concatenate([params["wq"] * scale, params["wk"], params["wv"]],
                           axis=1).astype(jnp.bfloat16)                  # (D, 3D)
    bqkv = jnp.concatenate([params["bq"] * scale, params["bk"], params["bv"]],
                           axis=1).astype(jnp.float32)                   # (1, 3D)
    wo = params["wo"].astype(jnp.bfloat16)
    bo = params["bo"].astype(jnp.float32)

    # Cast x to bf16 in the wrapper: halves the HBM->VMEM DMA bytes for the x blocks.
    x2d = x.astype(jnp.bfloat16).reshape(B * S, D)

    tm = _largest_divisor_tile(B * S, proj_tile)
    tq = _largest_divisor_tile(S, q_tile)
    tk = _largest_divisor_tile(S, kv_tile)

    # ---------------- stage 1: fused QKV projection ----------------
    qkv_ws = (2 * tm * D * 2            # x block (double-buffered, bf16)
              + 2 * D * 3 * D * 2       # fused QKV weight (bf16)
              + 2 * 3 * D * 4           # fused bias (f32)
              + 3 * 2 * tm * D * 2      # q/k/v output blocks (bf16)
              + tm * 3 * D * 4)         # f32 matmul result
    q, k, v = pl.pallas_call(
        functools.partial(_qkv_proj_kernel, d_model=D),
        out_shape=(jax.ShapeDtypeStruct((B * S, D), jnp.bfloat16),) * 3,
        grid_spec=pltpu.PrefetchScalarGridSpec(
            num_scalar_prefetch=0,
            grid=(B * S // tm,),
            in_specs=[
                pl.BlockSpec((tm, D), lambda i: (i, 0)),      # x tokens
                pl.BlockSpec((D, 3 * D), lambda i: (0, 0)),   # fused QKV weight
                pl.BlockSpec((1, 3 * D), lambda i: (0, 0)),   # fused QKV bias
            ],
            out_specs=[
                pl.BlockSpec((tm, D), lambda i: (i, 0)),
                pl.BlockSpec((tm, D), lambda i: (i, 0)),
                pl.BlockSpec((tm, D), lambda i: (i, 0)),
            ],
        ),
        compiler_params=pltpu.CompilerParams(
            dimension_semantics=("parallel",),
            vmem_limit_bytes=_vmem_limit_bytes(qkv_ws)),
    )(x2d, wqkv, bqkv)

    q = q.reshape(B, S, D)
    k = k.reshape(B, S, D)
    v = v.reshape(B, S, D)

    # -------- stage 2: flash-style ALiBi attention + output projection --------
    flash_ws = (2 * tq * D * 2          # q block
                + 2 * 2 * tk * D * 2    # k and v blocks
                + 2 * D * D * 2         # wo
                + 2 * D * 4             # bo
                + 2 * tq * D * 4        # output block (f32)
                + 2 * H * tq * 128 * 4  # m/l scratch (lane-padded)
                + tq * D * 4            # acc scratch
                + 2 * tq * tk * 4)      # score / p tiles
    kernel = functools.partial(_flash_alibi_kernel,
                               num_heads=H, head_dim=hd, kv_tile=tk)
    return pl.pallas_call(
        kernel,
        out_shape=jax.ShapeDtypeStruct((B, S, D), x.dtype),
        grid_spec=pltpu.PrefetchScalarGridSpec(
            num_scalar_prefetch=0,
            grid=(B, S // tq, S // tk),
            in_specs=[
                pl.BlockSpec((1, tq, D), lambda b, qi, ki: (b, qi, 0)),  # q
                pl.BlockSpec((1, tk, D), lambda b, qi, ki: (b, ki, 0)),  # k
                pl.BlockSpec((1, tk, D), lambda b, qi, ki: (b, ki, 0)),  # v
                pl.BlockSpec((D, D), lambda b, qi, ki: (0, 0)),          # out_proj W
                pl.BlockSpec((1, D), lambda b, qi, ki: (0, 0)),          # out_proj b
            ],
            out_specs=pl.BlockSpec((1, tq, D), lambda b, qi, ki: (b, qi, 0)),
            scratch_shapes=[
                pltpu.VMEM((H, tq, 1), jnp.float32),   # running max per head
                pltpu.VMEM((H, tq, 1), jnp.float32),   # running sum per head
                pltpu.VMEM((tq, D), jnp.float32),      # head-concatenated accumulator
            ],
        ),
        compiler_params=pltpu.CompilerParams(
            dimension_semantics=("parallel", "parallel", "arbitrary"),
            vmem_limit_bytes=_vmem_limit_bytes(flash_ws)),
    )(q, k, v, wo, bo)


def alibi_attention_ref(x, params, *, num_heads):
    """Pure-JAX f32 reference mirroring the PyTorch module exactly."""
    B, S, D = x.shape
    hd = D // num_heads
    q = (x @ params["wq"] + params["bq"]).reshape(B, S, num_heads, hd)
    k = (x @ params["wk"] + params["bk"]).reshape(B, S, num_heads, hd)
    v = (x @ params["wv"] + params["bv"]).reshape(B, S, num_heads, hd)
    scores = jnp.einsum('bqhd,bkhd->bhqk', q, k) * (hd ** -0.5)
    slopes = 1.0 / 2 ** (jnp.arange(num_heads, dtype=jnp.float32) / num_heads)
    rel = (jnp.arange(S)[None, :] - jnp.arange(S)[:, None]).astype(jnp.float32)
    scores = scores + (slopes[:, None, None] * rel[None])[None]
    attn = jax.nn.softmax(scores, axis=-1)
    ctx = jnp.einsum('bhqk,bkhd->bqhd', attn, v).reshape(B, S, D)
    return ctx @ params["wo"] + params["bo"]


def init_params(key, d_model):
    """Deterministic synthetic parameters (not a checkpoint load)."""
    ks = jax.random.split(key, 8)
    s = 0.02
    return {
        "wq": s * jax.random.normal(ks[0], (d_model, d_model), jnp.float32),
        "bq": s * jax.random.normal(ks[1], (1, d_model), jnp.float32),
        "wk": s * jax.random.normal(ks[2], (d_model, d_model), jnp.float32),
        "bk": s * jax.random.normal(ks[3], (1, d_model), jnp.float32),
        "wv": s * jax.random.normal(ks[4], (d_model, d_model), jnp.float32),
        "bv": s * jax.random.normal(ks[5], (1, d_model), jnp.float32),
        "wo": s * jax.random.normal(ks[6], (d_model, d_model), jnp.float32),
        "bo": s * jax.random.normal(ks[7], (1, d_model), jnp.float32),
    }


if __name__ == "__main__":
    # Small but lane-aligned shapes (d_model and head_dim multiples of 128).
    batch, seq, d_model, num_heads = 2, 128, 256, 2

    key = jax.random.PRNGKey(0)
    k_x, k_p = jax.random.split(key)
    x = jax.random.normal(k_x, (batch, seq, d_model), jnp.float32)
    params = init_params(k_p, d_model)

    out = alibi_attention(x, params, num_heads=num_heads)
    out = jax.block_until_ready(out)

    assert out.shape == (batch, seq, d_model)
    assert not bool(jnp.isnan(out).any())

    # Loose tolerance: kernel uses bf16 MXU operands + approx reciprocal (not f32 parity).
    ref = alibi_attention_ref(x, params, num_heads=num_heads)
    max_err = float(jnp.max(jnp.abs(out - ref)))
    assert max_err < 5e-2, f"max abs error vs reference too large: {max_err}"

    print("KERNEL_OK")
</pallas_src>

<mosaic_0001>
module attributes {stable_mosaic.version = 11 : i64} {
  func.func @_qkv_proj_kernel(%arg0: i32, %arg1: memref<256x256xbf16, #tpu.memory_space<vmem>>, %arg2: memref<256x768xbf16, #tpu.memory_space<vmem>>, %arg3: memref<1x768xf32, #tpu.memory_space<vmem>>, %arg4: memref<256x256xbf16, #tpu.memory_space<vmem>>, %arg5: memref<256x256xbf16, #tpu.memory_space<vmem>>, %arg6: memref<256x256xbf16, #tpu.memory_space<vmem>>) attributes {dimension_semantics = [#tpu.dimension_semantics<parallel>], iteration_bounds = array<i64: 1>, scalar_prefetch = 0 : i64, scratch_operands = 0 : i64, tpu.core_type = #tpu.core_type<tc>, window_params = [{transform_indices = @transform_0, window_bounds = array<i64: 256, 256>}, {pipeline_mode = #tpu.pipeline_mode<synchronous>, transform_indices = @transform_1, window_bounds = array<i64: 256, 768>}, {pipeline_mode = #tpu.pipeline_mode<synchronous>, transform_indices = @transform_2, window_bounds = array<i64: 1, 768>}, {transform_indices = @transform_3, window_bounds = array<i64: 256, 256>}, {transform_indices = @transform_4, window_bounds = array<i64: 256, 256>}, {transform_indices = @transform_5, window_bounds = array<i64: 256, 256>}]} {
    %c0 = arith.constant 0 : index
    %c0_0 = arith.constant 0 : index
    %0 = vector.load %arg1[%c0, %c0_0] : memref<256x256xbf16, #tpu.memory_space<vmem>>, vector<256x256xbf16>
    %c0_1 = arith.constant 0 : index
    %c0_2 = arith.constant 0 : index
    %1 = vector.load %arg2[%c0_1, %c0_2] : memref<256x768xbf16, #tpu.memory_space<vmem>>, vector<256x768xbf16>
    %cst = arith.constant dense<0.000000e+00> : vector<256x768xf32>
    %2 = tpu.matmul %0, %1, %cst {dimension_numbers = #tpu.dot_dimension_numbers<[1], [0], [0], [1], [0, 0, 1, 1], [], []>} : vector<256x256xbf16>, vector<256x768xbf16>, vector<256x768xf32> -> vector<256x768xf32>
    %c0_3 = arith.constant 0 : index
    %c0_4 = arith.constant 0 : index
    %3 = vector.load %arg3[%c0_3, %c0_4] : memref<1x768xf32, #tpu.memory_space<vmem>>, vector<1x768xf32>
    %4 = vector.broadcast %3 : vector<1x768xf32> to vector<256x768xf32>
    %5 = arith.addf %2, %4 : vector<256x768xf32>
    %6 = arith.truncf %5 : vector<256x768xf32> to vector<256x768xbf16>
    %7 = vector.extract_strided_slice %6 {offsets = [0, 0], sizes = [256, 256], strides = [1, 1]} : vector<256x768xbf16> to vector<256x256xbf16>
    %c0_5 = arith.constant 0 : index
    %c0_6 = arith.constant 0 : index
    %8 = vector.load %arg4[%c0_5, %c0_6] : memref<256x256xbf16, #tpu.memory_space<vmem>>, vector<256x256xbf16>
    tpu.vector_store %arg4[%c0_5, %c0_6], %7 {strides = array<i32>} : memref<256x256xbf16, #tpu.memory_space<vmem>>, vector<256x256xbf16>,
    %9 = vector.extract_strided_slice %6 {offsets = [0, 256], sizes = [256, 256], strides = [1, 1]} : vector<256x768xbf16> to vector<256x256xbf16>
    %c0_7 = arith.constant 0 : index
    %c0_8 = arith.constant 0 : index
    %10 = vector.load %arg5[%c0_7, %c0_8] : memref<256x256xbf16, #tpu.memory_space<vmem>>, vector<256x256xbf16>
    tpu.vector_store %arg5[%c0_7, %c0_8], %9 {strides = array<i32>} : memref<256x256xbf16, #tpu.memory_space<vmem>>, vector<256x256xbf16>,
    %11 = vector.extract_strided_slice %6 {offsets = [0, 512], sizes = [256, 256], strides = [1, 1]} : vector<256x768xbf16> to vector<256x256xbf16>
    %c0_9 = arith.constant 0 : index
    %c0_10 = arith.constant 0 : index
    %12 = vector.load %arg6[%c0_9, %c0_10] : memref<256x256xbf16, #tpu.memory_space<vmem>>, vector<256x256xbf16>
    tpu.vector_store %arg6[%c0_9, %c0_10], %11 {strides = array<i32>} : memref<256x256xbf16, #tpu.memory_space<vmem>>, vector<256x256xbf16>,
    return
  }
  func.func @transform_0(%arg0: i32) -> (i32, i32) {
    %c0_i32 = arith.constant 0 : i32
    %c0_i32_0 = arith.constant 0 : i32
    return %arg0, %c0_i32 : i32, i32
  }
  func.func @transform_1(%arg0: i32) -> (i32, i32) {
    %c0_i32 = arith.constant 0 : i32
    %c0_i32_0 = arith.constant 0 : i32
    %c0_i32_1 = arith.constant 0 : i32
    return %c0_i32, %c0_i32_0 : i32, i32
  }
  func.func @transform_2(%arg0: i32) -> (i32, i32) {
    %c0_i32 = arith.constant 0 : i32
    %c0_i32_0 = arith.constant 0 : i32
    %c0_i32_1 = arith.constant 0 : i32
    return %c0_i32, %c0_i32_0 : i32, i32
  }
  func.func @transform_3(%arg0: i32) -> (i32, i32) {
    %c0_i32 = arith.constant 0 : i32
    %c0_i32_0 = arith.constant 0 : i32
    return %arg0, %c0_i32 : i32, i32
  }
  func.func @transform_4(%arg0: i32) -> (i32, i32) {
    %c0_i32 = arith.constant 0 : i32
    %c0_i32_0 = arith.constant 0 : i32
    return %arg0, %c0_i32 : i32, i32
  }
  func.func @transform_5(%arg0: i32) -> (i32, i32) {
    %c0_i32 = arith.constant 0 : i32
    %c0_i32_0 = arith.constant 0 : i32
    return %arg0, %c0_i32 : i32, i32
  }
}

</mosaic_0001>

<llo_original>
// kernel: tpu_custom_call.1
$region0: #{tpu_custom_call.1}
  #allocation0 [shape = 'u32[]', space=smem, size = 0x4, offset = 0x4, fixed_abs, tag = 'smem constant byte address 0x4 - core index']
  #allocation1 [shape = 'u32[144,128]{1,0:T(1,128)}', space=vmem, size = 0x12000, scoped, tag = 'internal scratch']
  %s0 = inlined_call_operand.hbm [shape: bf16[256,256], index: 0, kind: input, shape index: {}]
  %s1 = inlined_call_operand.hbm [shape: bf16[256,768], index: 1, kind: input, shape index: {}]
  %s2 = inlined_call_operand.hbm [shape: f32[1,768], index: 2, kind: input, shape index: {}]
  %s3 = inlined_call_operand.hbm [shape: bf16[256,256], index: 3, kind: output, shape index: {0}]
  %s4 = inlined_call_operand.hbm [shape: bf16[256,256], index: 4, kind: output, shape index: {1}]
  %s5 = inlined_call_operand.hbm [shape: bf16[256,256], index: 5, kind: output, shape index: {2}]
  %6 = xla_tuple %s3, %s4, %s5
  %s7 = sld [smem:[#allocation0]]
  $region50: #{tpu_custom_call.1} parent=0
    _
  %s9 = ssub.s32 1, %s7
  %s10 = scalar_select 0, %s9, %s7
  $region1: #{tpu_custom_call.1} parent=0
    #allocation2 [shape = 'u8[131072]{0}', space=vmem, size = 0x20000, scoped, tag = 'input window, operand 0, single buffered']
    #allocation3 [shape = 's32[1]{0}', space=sflag, size = 0x4, scoped, tag = 'scoped memory for tpu_custom_call.1']
    #allocation4 [shape = 's32[1]{0}', space=sflag, size = 0x4, scoped, tag = 'scoped memory for tpu_custom_call.1']
    #allocation5 [shape = 'u8[393216]{0}', space=vmem, size = 0x60000, scoped, tag = 'input window, operand 1, single buffered']
    #allocation6 [shape = 's32[1]{0}', space=sflag, size = 0x4, scoped, tag = 'scoped memory for tpu_custom_call.1']
    #allocation7 [shape = 'u8[3072]{0}', space=vmem, size = 0xc00, scoped, tag = 'input window, operand 2, single buffered']
    #allocation8 [shape = 'u8[131072]{0}', space=vmem, size = 0x20000, scoped, tag = 'output window, operand 0, single buffered']
    #allocation9 [shape = 'u8[131072]{0}', space=vmem, size = 0x20000, scoped, tag = 'output window, operand 1, single buffered']
    #allocation10 [shape = 's32[1]{0}', space=sflag, size = 0x4, scoped, tag = 'scoped memory for tpu_custom_call.1']
    #allocation11 [shape = 'u8[131072]{0}', space=vmem, size = 0x20000, scoped, tag = 'output window, operand 2, single buffered']
    %11 = vsyncpa [#allocation3], 0
    %12 = vsyncpa [#allocation6], 0
    %13 = vsyncpa [#allocation4], 0
    %14 = vsyncpa [#allocation10], 0
    // Predicated region
    $region2: #{tpu_custom_call.1} parent=1 // pred_check
      _
    $region3: #{tpu_custom_call.1} parent=1 // pred_check_branch
      %16 = sbr.rel (0) target = $region5
    $region4: #{tpu_custom_call.1} parent=1 // pred_region
      %s18 = ssub.s32 4096, 4096
      %19 = vsyncadd [#allocation3], %s18
      %s20 = sshll.u32 [#allocation2], 4
      %s21 = int_to_ptr.vmem [resolvable:$true] %s20
      %26 = dma.hbm_to_vmem [thread:$0]  %s0, 4096, %s21, [#allocation3], 128, 128, 8
    $region5: #{tpu_custom_call.1} parent=1 // pred_fallthru
      _
    // Predicated region
    $region6: #{tpu_custom_call.1} parent=1 // pred_check
      _
    $region7: #{tpu_custom_call.1} parent=1 // pred_check_branch
      %28 = sbr.rel (0) target = $region9
    $region8: #{tpu_custom_call.1} parent=1 // pred_region
      %s30 = ssub.s32 12288, 12288
      %31 = vsyncadd [#allocation6], %s30
      %s32 = sshll.u32 [#allocation5], 4
      %s33 = int_to_ptr.vmem [resolvable:$true] %s32
      %38 = dma.hbm_to_vmem [thread:$0]  %s1, 12288, %s33, [#allocation6], 384, 384, 24
    $region9: #{tpu_custom_call.1} parent=1 // pred_fallthru
      _
    // Predicated region
    $region10: #{tpu_custom_call.1} parent=1 // pred_check
      _
    $region11: #{tpu_custom_call.1} parent=1 // pred_check_branch
      %40 = sbr.rel (0) target = $region13
    $region12: #{tpu_custom_call.1} parent=1 // pred_region
      %s42 = ssub.s32 96, 96
      %43 = vsyncadd [#allocation6], %s42
      %s45 = sshll.u32 [#allocation7], 4
      %s46 = int_to_ptr.vmem [resolvable:$true] %s45
      %48 = dma.hbm_to_vmem [thread:$0]  %s2, 96, %s46, [#allocation6]
    $region13: #{tpu_custom_call.1} parent=1 // pred_fallthru
      _
    // Predicated region
    $region14: #{tpu_custom_call.1} parent=1 // pred_check
      _
    $region15: #{tpu_custom_call.1} parent=1 // pred_check_branch
      %50 = sbr.rel (0) target = $region17
    $region16: #{tpu_custom_call.1} parent=1 // pred_region
      %51 = dma.done [#allocation3], 4096
    $region17: #{tpu_custom_call.1} parent=1 // pred_fallthru
      _
    // Predicated region
    $region18: #{tpu_custom_call.1} parent=1 // pred_check
      _
    $region19: #{tpu_custom_call.1} parent=1 // pred_check_branch
      %53 = sbr.rel (0) target = $region21
    $region20: #{tpu_custom_call.1} parent=1 // pred_region
      %54 = dma.done [#allocation6], 12288
    $region21: #{tpu_custom_call.1} parent=1 // pred_fallthru
      _
    // Predicated region
    $region22: #{tpu_custom_call.1} parent=1 // pred_check
      _
    $region23: #{tpu_custom_call.1} parent=1 // pred_check_branch
      %56 = sbr.rel (0) target = $region25
    $region24: #{tpu_custom_call.1} parent=1 // pred_region
      %57 = dma.done [#allocation6], 96
    $region25: #{tpu_custom_call.1} parent=1 // pred_fallthru
      _
    %v58 = vld [vmem:[#allocation2] sm:$0xff]
    %v59 = vld [vmem:[#allocation2 + $0x8] sm:$0xff]
    %v60 = vld [vmem:[#allocation2 + $0x10] sm:$0xff]
    %v61 = vld [vmem:[#allocation2 + $0x18] sm:$0xff]
    %v62 = vld [vmem:[#allocation2 + $0x20] sm:$0xff]
    %v63 = vld [vmem:[#allocation2 + $0x28] sm:$0xff]
    %v64 = vld [vmem:[#allocation2 + $0x30] sm:$0xff]
    %v65 = vld [vmem:[#allocation2 + $0x38] sm:$0xff]
    %v66 = vld [vmem:[#allocation2 + $0x40] sm:$0xff]
    %v67 = vld [vmem:[#allocation2 + $0x48] sm:$0xff]
    %v68 = vld [vmem:[#allocation2 + $0x50] sm:$0xff]
    %v69 = vld [vmem:[#allocation2 + $0x58] sm:$0xff]
    %v70 = vld [vmem:[#allocation2 + $0x60] sm:$0xff]
    %v71 = vld [vmem:[#allocation2 + $0x68] sm:$0xff]
    %v72 = vld [vmem:[#allocation2 + $0x70] sm:$0xff]
    %v73 = vld [vmem:[#allocation2 + $0x78] sm:$0xff]
    %v74 = vld [vmem:[#allocation2 + $0x80] sm:$0xff]
    %v75 = vld [vmem:[#allocation2 + $0x88] sm:$0xff]
    %v76 = vld [vmem:[#allocation2 + $0x90] sm:$0xff]
    %v77 = vld [vmem:[#allocation2 + $0x98] sm:$0xff]
    %v78 = vld [vmem:[#allocation2 + $0xa0] sm:$0xff]
    %v79 = vld [vmem:[#allocation2 + $0xa8] sm:$0xff]
    %v80 = vld [vmem:[#allocation2 + $0xb0] sm:$0xff]
    %v81 = vld [vmem:[#allocation2 + $0xb8] sm:$0xff]
    %v82 = vld [vmem:[#allocation2 + $0xc0] sm:$0xff]
    %v83 = vld [vmem:[#allocation2 + $0xc8] sm:$0xff]
    %v84 = vld [vmem:[#allocation2 + $0xd0] sm:$0xff]
    %v85 = vld [vmem:[#allocation2 + $0xd8] sm:$0xff]
    %v86 = vld [vmem:[#allocation2 + $0xe0] sm:$0xff]
    %v87 = vld [vmem:[#allocation2 + $0xe8] sm:$0xff]
    %v88 = vld [vmem:[#allocation2 + $0xf0] sm:$0xff]
    %v89 = vld [vmem:[#allocation2 + $0xf8] sm:$0xff]
    %v90 = vld [vmem:[#allocation5] sm:$0xff]
    %v91 = vld [vmem:[#allocation5 + $0x8] sm:$0xff]
    %v92 = vld [vmem:[#allocation5 + $0x10] sm:$0xff]
    %v93 = vld [vmem:[#allocation5 + $0x18] sm:$0xff]
    %v94 = vld [vmem:[#allocation5 + $0x20] sm:$0xff]
    %v95 = vld [vmem:[#allocation5 + $0x28] sm:$0xff]
    %v96 = vld [vmem:[#allocation5 + $0x30] sm:$0xff]
    %v97 = vld [vmem:[#allocation5 + $0x38] sm:$0xff]
    %v98 = vld [vmem:[#allocation5 + $0x40] sm:$0xff]
    %v99 = vld [vmem:[#allocation5 + $0x48] sm:$0xff]
    %v100 = vld [vmem:[#allocation5 + $0x50] sm:$0xff]
    %v101 = vld [vmem:[#allocation5 + $0x58] sm:$0xff]
    %v102 = vld [vmem:[#allocation5 + $0x60] sm:$0xff]
    %v103 = vld [vmem:[#allocation5 + $0x68] sm:$0xff]
    %v104 = vld [vmem:[#allocation5 + $0x70] sm:$0xff]
    %v105 = vld [vmem:[#allocation5 + $0x78] sm:$0xff]
    %v106 = vld [vmem:[#allocation5 + $0x80] sm:$0xff]
    %v107 = vld [vmem:[#allocation5 + $0x88] sm:$0xff]
    %v108 = vld [vmem:[#allocation5 + $0x90] sm:$0xff]
    %v109 = vld [vmem:[#allocation5 + $0x98] sm:$0xff]
    %v110 = vld [vmem:[#allocation5 + $0xa0] sm:$0xff]
    %v111 = vld [vmem:[#allocation5 + $0xa8] sm:$0xff]
    %v112 = vld [vmem:[#allocation5 + $0xb0] sm:$0xff]
    %v113 = vld [vmem:[#allocation5 + $0xb8] sm:$0xff]
    %v114 = vld [vmem:[#allocation5 + $0xc0] sm:$0xff]
    %v115 = vld [vmem:[#allocation5 + $0xc8] sm:$0xff]
    %v116 = vld [vmem:[#allocation5 + $0xd0] sm:$0xff]
    %v117 = vld [vmem:[#allocation5 + $0xd8] sm:$0xff]
    %v118 = vld [vmem:[#allocation5 + $0xe0] sm:$0xff]
    %v119 = vld [vmem:[#allocation5 + $0xe8] sm:$0xff]
    %v120 = vld [vmem:[#allocation5 + $0xf0] sm:$0xff]
    %v121 = vld [vmem:[#allocation5 + $0xf8] sm:$0xff]
    %v122 = vld [vmem:[#allocation5 + $0x100] sm:$0xff]
    %v123 = vld [vmem:[#allocation5 + $0x108] sm:$0xff]
    %v124 = vld [vmem:[#allocation5 + $0x110] sm:$0xff]
    %v125 = vld [vmem:[#allocation5 + $0x118] sm:$0xff]
    %v126 = vld [vmem:[#allocation5 + $0x120] sm:$0xff]
    %v127 = vld [vmem:[#allocation5 + $0x128] sm:$0xff]
    %v128 = vld [vmem:[#allocation5 + $0x130] sm:$0xff]
    %v129 = vld [vmem:[#allocation5 + $0x138] sm:$0xff]
    %v130 = vld [vmem:[#allocation5 + $0x140] sm:$0xff]
    %v131 = vld [vmem:[#allocation5 + $0x148] sm:$0xff]
    %v132 = vld [vmem:[#allocation5 + $0x150] sm:$0xff]
    %v133 = vld [vmem:[#allocation5 + $0x158] sm:$0xff]
    %v134 = vld [vmem:[#allocation5 + $0x160] sm:$0xff]
    %v135 = vld [vmem:[#allocation5 + $0x168] sm:$0xff]
    %v136 = vld [vmem:[#allocation5 + $0x170] sm:$0xff]
    %v137 = vld [vmem:[#allocation5 + $0x178] sm:$0xff]
    %v138 = vld [vmem:[#allocation5 + $0x180] sm:$0xff]
    %v139 = vld [vmem:[#allocation5 + $0x188] sm:$0xff]
    %v140 = vld [vmem:[#allocation5 + $0x190] sm:$0xff]
    %v141 = vld [vmem:[#allocation5 + $0x198] sm:$0xff]
    %v142 = vld [vmem:[#allocation5 + $0x1a0] sm:$0xff]
    %v143 = vld [vmem:[#allocation5 + $0x1a8] sm:$0xff]
    %v144 = vld [vmem:[#allocation5 + $0x1b0] sm:$0xff]
    %v145 = vld [vmem:[#allocation5 + $0x1b8] sm:$0xff]
    %v146 = vld [vmem:[#allocation5 + $0x1c0] sm:$0xff]
    %v147 = vld [vmem:[#allocation5 + $0x1c8] sm:$0xff]
    %v148 = vld [vmem:[#allocation5 + $0x1d0] sm:$0xff]
    %v149 = vld [vmem:[#allocation5 + $0x1d8] sm:$0xff]
    %v150 = vld [vmem:[#allocation5 + $0x1e0] sm:$0xff]
    %v151 = vld [vmem:[#allocation5 + $0x1e8] sm:$0xff]
    %v152 = vld [vmem:[#allocation5 + $0x1f0] sm:$0xff]
    %v153 = vld [vmem:[#allocation5 + $0x1f8] sm:$0xff]
    %v154 = vld [vmem:[#allocation5 + $0x200] sm:$0xff]
    %v155 = vld [vmem:[#allocation5 + $0x208] sm:$0xff]
    %v156 = vld [vmem:[#allocation5 + $0x210] sm:$0xff]
    %v157 = vld [vmem:[#allocation5 + $0x218] sm:$0xff]
    %v158 = vld [vmem:[#allocation5 + $0x220] sm:$0xff]
    %v159 = vld [vmem:[#allocation5 + $0x228] sm:$0xff]
    %v160 = vld [vmem:[#allocation5 + $0x230] sm:$0xff]
    %v161 = vld [vmem:[#allocation5 + $0x238] sm:$0xff]
    %v162 = vld [vmem:[#allocation5 + $0x240] sm:$0xff]
    %v163 = vld [vmem:[#allocation5 + $0x248] sm:$0xff]
    %v164 = vld [vmem:[#allocation5 + $0x250] sm:$0xff]
    %v165 = vld [vmem:[#allocation5 + $0x258] sm:$0xff]
    %v166 = vld [vmem:[#allocation5 + $0x260] sm:$0xff]
    %v167 = vld [vmem:[#allocation5 + $0x268] sm:$0xff]
    %v168 = vld [vmem:[#allocation5 + $0x270] sm:$0xff]
    %v169 = vld [vmem:[#allocation5 + $0x278] sm:$0xff]
    %v170 = vld [vmem:[#allocation5 + $0x280] sm:$0xff]
    %v171 = vld [vmem:[#allocation5 + $0x288] sm:$0xff]
    %v172 = vld [vmem:[#allocation5 + $0x290] sm:$0xff]
    %v173 = vld [vmem:[#allocation5 + $0x298] sm:$0xff]
    %v174 = vld [vmem:[#allocation5 + $0x2a0] sm:$0xff]
    %v175 = vld [vmem:[#allocation5 + $0x2a8] sm:$0xff]
    %v176 = vld [vmem:[#allocation5 + $0x2b0] sm:$0xff]
    %v177 = vld [vmem:[#allocation5 + $0x2b8] sm:$0xff]
    %v178 = vld [vmem:[#allocation5 + $0x2c0] sm:$0xff]
    %v179 = vld [vmem:[#allocation5 + $0x2c8] sm:$0xff]
    %v180 = vld [vmem:[#allocation5 + $0x2d0] sm:$0xff]
    %v181 = vld [vmem:[#allocation5 + $0x2d8] sm:$0xff]
    %v182 = vld [vmem:[#allocation5 + $0x2e0] sm:$0xff]
    %v183 = vld [vmem:[#allocation5 + $0x2e8] sm:$0xff]
    %v184 = vld [vmem:[#allocation5 + $0x2f0] sm:$0xff]
    %v185 = vld [vmem:[#allocation5 + $0x2f8] sm:$0xff]
    %v186 = vld [vmem:[#allocation7] sm:$0x3f]
    %v188 = vlaneseq
    %v189 = vshrl.u32 %v188, 7
    %v190 = vsub.s32 0, %v189
    %v191 = vrot.slane %v186, %v190
    %v192 = vlaneseq
    %v193 = vshrl.u32 %v192, 7
    %v194 = vsub.s32 1, %v193
    %v195 = vrot.slane %v186, %v194
    %v196 = vlaneseq
    %v197 = vshrl.u32 %v196, 7
    %v198 = vsub.s32 2, %v197
    %v199 = vrot.slane %v186, %v198
    %v200 = vlaneseq
    %v201 = vshrl.u32 %v200, 7
    %v202 = vsub.s32 3, %v201
    %v203 = vrot.slane %v186, %v202
    %v204 = vlaneseq
    %v205 = vshrl.u32 %v204, 7
    %v206 = vsub.s32 4, %v205
    %v207 = vrot.slane %v186, %v206
    %v208 = vlaneseq
    %v209 = vshrl.u32 %v208, 7
    %v210 = vsub.s32 5, %v209
    %v211 = vrot.slane %v186, %v210
    %v250 = vunpack.c.l.b16 %v58
    %v251 = vunpack.c.h.b16 %v58
    %v252 = vunpack.c.l.b16 %v59
    %v253 = vunpack.c.h.b16 %v59
    %v254 = vunpack.c.l.b16 %v60
    %v255 = vunpack.c.h.b16 %v60
    %v256 = vunpack.c.l.b16 %v61
    %v257 = vunpack.c.h.b16 %v61
    %v258 = vunpack.c.l.b16 %v62
    %v259 = vunpack.c.h.b16 %v62
    %v260 = vunpack.c.l.b16 %v63
    %v261 = vunpack.c.h.b16 %v63
    %v262 = vunpack.c.l.b16 %v64
    %v263 = vunpack.c.h.b16 %v64
    %v264 = vunpack.c.l.b16 %v65
    %v265 = vunpack.c.h.b16 %v65
    %v266 = vunpack.c.l.b16 %v66
    %v267 = vunpack.c.h.b16 %v66
    %v268 = vunpack.c.l.b16 %v67
    %v269 = vunpack.c.h.b16 %v67
    %v270 = vunpack.c.l.b16 %v68
    %v271 = vunpack.c.h.b16 %v68
    %v272 = vunpack.c.l.b16 %v69
    %v273 = vunpack.c.h.b16 %v69
    %v274 = vunpack.c.l.b16 %v70
    %v275 = vunpack.c.h.b16 %v70
    %v276 = vunpack.c.l.b16 %v71
    %v277 = vunpack.c.h.b16 %v71
    %v278 = vunpack.c.l.b16 %v72
    %v279 = vunpack.c.h.b16 %v72
    %v280 = vunpack.c.l.b16 %v73
    %v281 = vunpack.c.h.b16 %v73
    %v282 = vunpack.c.l.b16 %v74
    %v283 = vunpack.c.h.b16 %v74
    %v284 = vunpack.c.l.b16 %v75
    %v285 = vunpack.c.h.b16 %v75
    %v286 = vunpack.c.l.b16 %v76
    %v287 = vunpack.c.h.b16 %v76
    %v288 = vunpack.c.l.b16 %v77
    %v289 = vunpack.c.h.b16 %v77
    %v290 = vunpack.c.l.b16 %v78
    %v291 = vunpack.c.h.b16 %v78
    %v292 = vunpack.c.l.b16 %v79
    %v293 = vunpack.c.h.b16 %v79
    %v294 = vunpack.c.l.b16 %v80
    %v295 = vunpack.c.h.b16 %v80
    %v296 = vunpack.c.l.b16 %v81
    %v297 = vunpack.c.h.b16 %v81
    %v298 = vunpack.c.l.b16 %v82
    %v299 = vunpack.c.h.b16 %v82
    %v300 = vunpack.c.l.b16 %v83
    %v301 = vunpack.c.h.b16 %v83
    %v302 = vunpack.c.l.b16 %v84
    %v303 = vunpack.c.h.b16 %v84
    %v304 = vunpack.c.l.b16 %v85
    %v305 = vunpack.c.h.b16 %v85
    %v306 = vunpack.c.l.b16 %v86
    %v307 = vunpack.c.h.b16 %v86
    %v308 = vunpack.c.l.b16 %v87
    %v309 = vunpack.c.h.b16 %v87
    %v310 = vunpack.c.l.b16 %v88
    %v311 = vunpack.c.h.b16 %v88
    %v312 = vunpack.c.l.b16 %v89
    %v313 = vunpack.c.h.b16 %v89
    %v314 = vpack.c.b16 %v252, %v250
    %v315 = vpack.c.b16 %v253, %v251
    %v316 = vpack.c.b16 %v256, %v254
    %v317 = vpack.c.b16 %v257, %v255
    %v318 = vpack.c.b16 %v260, %v258
    %v319 = vpack.c.b16 %v261, %v259
    %v320 = vpack.c.b16 %v264, %v262
    %v321 = vpack.c.b16 %v265, %v263
    %v322 = vpack.c.b16 %v268, %v266
    %v323 = vpack.c.b16 %v269, %v267
    %v324 = vpack.c.b16 %v272, %v270
    %v325 = vpack.c.b16 %v273, %v271
    %v326 = vpack.c.b16 %v276, %v274
    %v327 = vpack.c.b16 %v277, %v275
    %v328 = vpack.c.b16 %v280, %v278
    %v329 = vpack.c.b16 %v281, %v279
    %v330 = vpack.c.b16 %v284, %v282
    %v331 = vpack.c.b16 %v285, %v283
    %v332 = vpack.c.b16 %v288, %v286
    %v333 = vpack.c.b16 %v289, %v287
    %v334 = vpack.c.b16 %v292, %v290
    %v335 = vpack.c.b16 %v293, %v291
    %v336 = vpack.c.b16 %v296, %v294
    %v337 = vpack.c.b16 %v297, %v295
    %v338 = vpack.c.b16 %v300, %v298
    %v339 = vpack.c.b16 %v301, %v299
    %v340 = vpack.c.b16 %v304, %v302
    %v341 = vpack.c.b16 %v305, %v303
    %v342 = vpack.c.b16 %v308, %v306
    %v343 = vpack.c.b16 %v309, %v307
    %v344 = vpack.c.b16 %v312, %v310
    %v345 = vpack.c.b16 %v313, %v311
    %v474 = vunpack.c.l.b16 %v90
    %v475 = vunpack.c.h.b16 %v90
    %v476 = vunpack.c.l.b16 %v91
    %v477 = vunpack.c.h.b16 %v91
    %v478 = vunpack.c.l.b16 %v92
    %v479 = vunpack.c.h.b16 %v92
    %v480 = vunpack.c.l.b16 %v93
    %v481 = vunpack.c.h.b16 %v93
    %v482 = vunpack.c.l.b16 %v94
    %v483 = vunpack.c.h.b16 %v94
    %v484 = vunpack.c.l.b16 %v95
    %v485 = vunpack.c.h.b16 %v95
    %v486 = vunpack.c.l.b16 %v96
    %v487 = vunpack.c.h.b16 %v96
    %v488 = vunpack.c.l.b16 %v97
    %v489 = vunpack.c.h.b16 %v97
    %v490 = vunpack.c.l.b16 %v98
    %v491 = vunpack.c.h.b16 %v98
    %v492 = vunpack.c.l.b16 %v99
    %v493 = vunpack.c.h.b16 %v99
    %v494 = vunpack.c.l.b16 %v100
    %v495 = vunpack.c.h.b16 %v100
    %v496 = vunpack.c.l.b16 %v101
    %v497 = vunpack.c.h.b16 %v101
    %v498 = vunpack.c.l.b16 %v102
    %v499 = vunpack.c.h.b16 %v102
    %v500 = vunpack.c.l.b16 %v103
    %v501 = vunpack.c.h.b16 %v103
    %v502 = vunpack.c.l.b16 %v104
    %v503 = vunpack.c.h.b16 %v104
    %v504 = vunpack.c.l.b16 %v105
    %v505 = vunpack.c.h.b16 %v105
    %v506 = vunpack.c.l.b16 %v106
    %v507 = vunpack.c.h.b16 %v106
    %v508 = vunpack.c.l.b16 %v107
    %v509 = vunpack.c.h.b16 %v107
    %v510 = vunpack.c.l.b16 %v108
    %v511 = vunpack.c.h.b16 %v108
    %v512 = vunpack.c.l.b16 %v109
    %v513 = vunpack.c.h.b16 %v109
    %v514 = vunpack.c.l.b16 %v110
    %v515 = vunpack.c.h.b16 %v110
    %v516 = vunpack.c.l.b16 %v111
    %v517 = vunpack.c.h.b16 %v111
    %v518 = vunpack.c.l.b16 %v112
    %v519 = vunpack.c.h.b16 %v112
    %v520 = vunpack.c.l.b16 %v113
    %v521 = vunpack.c.h.b16 %v113
    %v522 = vunpack.c.l.b16 %v114
    %v523 = vunpack.c.h.b16 %v114
    %v524 = vunpack.c.l.b16 %v115
    %v525 = vunpack.c.h.b16 %v115
    %v526 = vunpack.c.l.b16 %v116
    %v527 = vunpack.c.h.b16 %v116
    %v528 = vunpack.c.l.b16 %v117
    %v529 = vunpack.c.h.b16 %v117
    %v530 = vunpack.c.l.b16 %v118
    %v531 = vunpack.c.h.b16 %v118
    %v532 = vunpack.c.l.b16 %v119
    %v533 = vunpack.c.h.b16 %v119
    %v534 = vunpack.c.l.b16 %v120
    %v535 = vunpack.c.h.b16 %v120
    %v536 = vunpack.c.l.b16 %v121
    %v537 = vunpack.c.h.b16 %v121
    %v538 = vunpack.c.l.b16 %v122
    %v539 = vunpack.c.h.b16 %v122
    %v540 = vunpack.c.l.b16 %v123
    %v541 = vunpack.c.h.b16 %v123
    %v542 = vunpack.c.l.b16 %v124
    %v543 = vunpack.c.h.b16 %v124
    %v544 = vunpack.c.l.b16 %v125
    %v545 = vunpack.c.h.b16 %v125
    %v546 = vunpack.c.l.b16 %v126
    %v547 = vunpack.c.h.b16 %v126
    %v548 = vunpack.c.l.b16 %v127
    %v549 = vunpack.c.h.b16 %v127
    %v550 = vunpack.c.l.b16 %v128
    %v551 = vunpack.c.h.b16 %v128
    %v552 = vunpack.c.l.b16 %v129
    %v553 = vunpack.c.h.b16 %v129
    %v554 = vunpack.c.l.b16 %v130
    %v555 = vunpack.c.h.b16 %v130
    %v556 = vunpack.c.l.b16 %v131
    %v557 = vunpack.c.h.b16 %v131
    %v558 = vunpack.c.l.b16 %v132
    %v559 = vunpack.c.h.b16 %v132
    %v560 = vunpack.c.l.b16 %v133
    %v561 = vunpack.c.h.b16 %v133
    %v562 = vunpack.c.l.b16 %v134
    %v563 = vunpack.c.h.b16 %v134
    %v564 = vunpack.c.l.b16 %v135
    %v565 = vunpack.c.h.b16 %v135
    %v566 = vunpack.c.l.b16 %v136
    %v567 = vunpack.c.h.b16 %v136
    %v568 = vunpack.c.l.b16 %v137
    %v569 = vunpack.c.h.b16 %v137
    %v570 = vunpack.c.l.b16 %v138
    %v571 = vunpack.c.h.b16 %v138
    %v572 = vunpack.c.l.b16 %v139
    %v573 = vunpack.c.h.b16 %v139
    %v574 = vunpack.c.l.b16 %v140
    %v575 = vunpack.c.h.b16 %v140
    %v576 = vunpack.c.l.b16 %v141
    %v577 = vunpack.c.h.b16 %v141
    %v578 = vunpack.c.l.b16 %v142
    %v579 = vunpack.c.h.b16 %v142
    %v580 = vunpack.c.l.b16 %v143
    %v581 = vunpack.c.h.b16 %v143
    %v582 = vunpack.c.l.b16 %v144
    %v583 = vunpack.c.h.b16 %v144
    %v584 = vunpack.c.l.b16 %v145
    %v585 = vunpack.c.h.b16 %v145
    %v586 = vunpack.c.l.b16 %v146
    %v587 = vunpack.c.h.b16 %v146
    %v588 = vunpack.c.l.b16 %v147
    %v589 = vunpack.c.h.b16 %v147
    %v590 = vunpack.c.l.b16 %v148
    %v591 = vunpack.c.h.b16 %v148
    %v592 = vunpack.c.l.b16 %v149
    %v593 = vunpack.c.h.b16 %v149
    %v594 = vunpack.c.l.b16 %v150
    %v595 = vunpack.c.h.b16 %v150
    %v596 = vunpack.c.l.b16 %v151
    %v597 = vunpack.c.h.b16 %v151
    %v598 = vunpack.c.l.b16 %v152
    %v599 = vunpack.c.h.b16 %v152
    %v600 = vunpack.c.l.b16 %v153
    %v601 = vunpack.c.h.b16 %v153
    %v602 = vunpack.c.l.b16 %v154
    %v603 = vunpack.c.h.b16 %v154
    %v604 = vunpack.c.l.b16 %v155
    %v605 = vunpack.c.h.b16 %v155
    %v606 = vunpack.c.l.b16 %v156
    %v607 = vunpack.c.h.b16 %v156
    %v608 = vunpack.c.l.b16 %v157
    %v609 = vunpack.c.h.b16 %v157
    %v610 = vunpack.c.l.b16 %v158
    %v611 = vunpack.c.h.b16 %v158
    %v612 = vunpack.c.l.b16 %v159
    %v613 = vunpack.c.h.b16 %v159
    %v614 = vunpack.c.l.b16 %v160
    %v615 = vunpack.c.h.b16 %v160
    %v616 = vunpack.c.l.b16 %v161
    %v617 = vunpack.c.h.b16 %v161
    %v618 = vunpack.c.l.b16 %v162
    %v619 = vunpack.c.h.b16 %v162
    %v620 = vunpack.c.l.b16 %v163
    %v621 = vunpack.c.h.b16 %v163
    %v622 = vunpack.c.l.b16 %v164
    %v623 = vunpack.c.h.b16 %v164
    %v624 = vunpack.c.l.b16 %v165
    %v625 = vunpack.c.h.b16 %v165
    %v626 = vunpack.c.l.b16 %v166
    %v627 = vunpack.c.h.b16 %v166
    %v628 = vunpack.c.l.b16 %v167
    %v629 = vunpack.c.h.b16 %v167
    %v630 = vunpack.c.l.b16 %v168
    %v631 = vunpack.c.h.b16 %v168
    %v632 = vunpack.c.l.b16 %v169
    %v633 = vunpack.c.h.b16 %v169
    %v634 = vunpack.c.l.b16 %v170
    %v635 = vunpack.c.h.b16 %v170
    %v636 = vunpack.c.l.b16 %v171
    %v637 = vunpack.c.h.b16 %v171
    %v638 = vunpack.c.l.b16 %v172
    %v639 = vunpack.c.h.b16 %v172
    %v640 = vunpack.c.l.b16 %v173
    %v641 = vunpack.c.h.b16 %v173
    %v642 = vunpack.c.l.b16 %v174
    %v643 = vunpack.c.h.b16 %v174
    %v644 = vunpack.c.l.b16 %v175
    %v645 = vunpack.c.h.b16 %v175
    %v646 = vunpack.c.l.b16 %v176
    %v647 = vunpack.c.h.b16 %v176
    %v648 = vunpack.c.l.b16 %v177
    %v649 = vunpack.c.h.b16 %v177
    %v650 = vunpack.c.l.b16 %v178
    %v651 = vunpack.c.h.b16 %v178
    %v652 = vunpack.c.l.b16 %v179
    %v653 = vunpack.c.h.b16 %v179
    %v654 = vunpack.c.l.b16 %v180
    %v655 = vunpack.c.h.b16 %v180
    %v656 = vunpack.c.l.b16 %v181
    %v657 = vunpack.c.h.b16 %v181
    %v658 = vunpack.c.l.b16 %v182
    %v659 = vunpack.c.h.b16 %v182
    %v660 = vunpack.c.l.b16 %v183
    %v661 = vunpack.c.h.b16 %v183
    %v662 = vunpack.c.l.b16 %v184
    %v663 = vunpack.c.h.b16 %v184
    %v664 = vunpack.c.l.b16 %v185
    %v665 = vunpack.c.h.b16 %v185
    %v666 = vpack.c.b16 %v480, %v474
    %v667 = vpack.c.b16 %v481, %v475
    %v668 = vpack.c.b16 %v482, %v476
    %v669 = vpack.c.b16 %v483, %v477
    %v670 = vpack.c.b16 %v484, %v478
    %v671 = vpack.c.b16 %v485, %v479
    %v672 = vpack.c.b16 %v492, %v486
    %v673 = vpack.c.b16 %v493, %v487
    %v674 = vpack.c.b16 %v494, %v488
    %v675 = vpack.c.b16 %v495, %v489
    %v676 = vpack.c.b16 %v496, %v490
    %v677 = vpack.c.b16 %v497, %v491
    %v678 = vpack.c.b16 %v504, %v498
    %v679 = vpack.c.b16 %v505, %v499
    %v680 = vpack.c.b16 %v506, %v500
    %v681 = vpack.c.b16 %v507, %v501
    %v682 = vpack.c.b16 %v508, %v502
    %v683 = vpack.c.b16 %v509, %v503
    %v684 = vpack.c.b16 %v516, %v510
    %v685 = vpack.c.b16 %v517, %v511
    %v686 = vpack.c.b16 %v518, %v512
    %v687 = vpack.c.b16 %v519, %v513
    %v688 = vpack.c.b16 %v520, %v514
    %v689 = vpack.c.b16 %v521, %v515
    %v690 = vpack.c.b16 %v528, %v522
    %v691 = vpack.c.b16 %v529, %v523
    %v692 = vpack.c.b16 %v530, %v524
    %v693 = vpack.c.b16 %v531, %v525
    %v694 = vpack.c.b16 %v532, %v526
    %v695 = vpack.c.b16 %v533, %v527
    %v696 = vpack.c.b16 %v540, %v534
    %v697 = vpack.c.b16 %v541, %v535
    %v698 = vpack.c.b16 %v542, %v536
    %v699 = vpack.c.b16 %v543, %v537
    %v700 = vpack.c.b16 %v544, %v538
    %v701 = vpack.c.b16 %v545, %v539
    %v702 = vpack.c.b16 %v552, %v546
    %v703 = vpack.c.b16 %v553, %v547
    %v704 = vpack.c.b16 %v554, %v548
    %v705 = vpack.c.b16 %v555, %v549
    %v706 = vpack.c.b16 %v556, %v550
    %v707 = vpack.c.b16 %v557, %v551
    %v708 = vpack.c.b16 %v564, %v558
    %v709 = vpack.c.b16 %v565, %v559
    %v710 = vpack.c.b16 %v566, %v560
    %v711 = vpack.c.b16 %v567, %v561
    %v712 = vpack.c.b16 %v568, %v562
    %v713 = vpack.c.b16 %v569, %v563
    %v714 = vpack.c.b16 %v576, %v570
    %v715 = vpack.c.b16 %v577, %v571
    %v716 = vpack.c.b16 %v578, %v572
    %v717 = vpack.c.b16 %v579, %v573
    %v718 = vpack.c.b16 %v580, %v574
    %v719 = vpack.c.b16 %v581, %v575
    %v720 = vpack.c.b16 %v588, %v582
    %v721 = vpack.c.b16 %v589, %v583
    %v722 = vpack.c.b16 %v590, %v584
    %v723 = vpack.c.b16 %v591, %v585
    %v724 = vpack.c.b16 %v592, %v586
    %v725 = vpack.c.b16 %v593, %v587
    %v726 = vpack.c.b16 %v600, %v594
    %v727 = vpack.c.b16 %v601, %v595
    %v728 = vpack.c.b16 %v602, %v596
    %v729 = vpack.c.b16 %v603, %v597
    %v730 = vpack.c.b16 %v604, %v598
    %v731 = vpack.c.b16 %v605, %v599
    %v732 = vpack.c.b16 %v612, %v606
    %v733 = vpack.c.b16 %v613, %v607
    %v734 = vpack.c.b16 %v614, %v608
    %v735 = vpack.c.b16 %v615, %v609
    %v736 = vpack.c.b16 %v616, %v610
    %v737 = vpack.c.b16 %v617, %v611
    %v738 = vpack.c.b16 %v624, %v618
    %v739 = vpack.c.b16 %v625, %v619
    %v740 = vpack.c.b16 %v626, %v620
    %v741 = vpack.c.b16 %v627, %v621
    %v742 = vpack.c.b16 %v628, %v622
    %v743 = vpack.c.b16 %v629, %v623
    %v744 = vpack.c.b16 %v636, %v630
    %v745 = vpack.c.b16 %v637, %v631
    %v746 = vpack.c.b16 %v638, %v632
    %v747 = vpack.c.b16 %v639, %v633
    %v748 = vpack.c.b16 %v640, %v634
    %v749 = vpack.c.b16 %v641, %v635
    %v750 = vpack.c.b16 %v648, %v642
    %v751 = vpack.c.b16 %v649, %v643
    %v752 = vpack.c.b16 %v650, %v644
    %v753 = vpack.c.b16 %v651, %v645
    %v754 = vpack.c.b16 %v652, %v646
    %v755 = vpack.c.b16 %v653, %v647
    %v756 = vpack.c.b16 %v660, %v654
    %v757 = vpack.c.b16 %v661, %v655
    %v758 = vpack.c.b16 %v662, %v656
    %v759 = vpack.c.b16 %v663, %v657
    %v760 = vpack.c.b16 %v664, %v658
    %v761 = vpack.c.b16 %v665, %v659
    %858 = vmatprep.subr.bf16.mxu0 %v709
    %859 = vmatpush1.bf16.msra.mxu0 %v708
    %860 = vmatprep.subr.bf16.mxu0 %v703
    %861 = vmatpush1.bf16.msra.mxu0 %v702
    %862 = vmatprep.subr.bf16.mxu0 %v697
    %863 = vmatpush1.bf16.msra.mxu0 %v696
    %864 = vmatprep.subr.bf16.mxu0 %v691
    %865 = vmatpush1.bf16.msra.mxu0 %v690
    %866 = vmatprep.subr.bf16.mxu0 %v685
    %867 = vmatpush1.bf16.msra.mxu0 %v684
    %868 = vmatprep.subr.bf16.mxu0 %v679
    %869 = vmatpush1.bf16.msra.mxu0 %v678
    %870 = vmatprep.subr.bf16.mxu0 %v673
    %871 = vmatpush1.bf16.msra.mxu0 %v672
    %872 = vmatprep.subr.bf16.mxu0 %v667
    %873 = vmatpush1.bf16.msra.mxu0 %v666
    %874 = vmatprep.subr.bf16.mxu0 %v757
    %875 = vmatpush2.bf16.msra.mxu0 %v756
    %876 = vmatprep.subr.bf16.mxu0 %v751
    %877 = vmatpush2.bf16.msra.mxu0 %v750
    %878 = vmatprep.subr.bf16.mxu0 %v745
    %879 = vmatpush2.bf16.msra.mxu0 %v744
    %880 = vmatprep.subr.bf16.mxu0 %v739
    %881 = vmatpush2.bf16.msra.mxu0 %v738
    %882 = vmatprep.subr.bf16.mxu0 %v733
    %883 = vmatpush2.bf16.msra.mxu0 %v732
    %884 = vmatprep.subr.bf16.mxu0 %v727
    %885 = vmatpush2.bf16.msra.mxu0 %v726
    %886 = vmatprep.subr.bf16.mxu0 %v721
    %887 = vmatpush2.bf16.msra.mxu0 %v720
    %888 = vmatprep.subr.bf16.mxu0 %v715
    %889 = vmatpush2.bf16.msra.mxu0 %v714
    %890 = vmatprep.mubr.bf16.mxu0 %v315
    %891 = vmatmul.mubr.bf16.gmra.mxu0 %v314
    %v892 = vpop.f32.mrf.mxu0
    %v893 = vadd.f32 %v191, %v892
    %v894 = vpop.f32.mrf.mxu0
    %v895 = vadd.f32 %v195, %v894
    %v896 = vpop.f32.mrf.mxu0
    %v897 = vadd.f32 %v191, %v896
    %v898 = vpop.f32.mrf.mxu0
    %v899 = vadd.f32 %v195, %v898
    %900 = vmatprep.mubr.bf16.mxu0 %v317
    %901 = vmatmul.mubr.bf16.gmra.mxu0 %v316
    %v902 = vpop.f32.mrf.mxu0
    %v903 = vadd.f32 %v191, %v902
    %v904 = vpop.f32.mrf.mxu0
    %v905 = vadd.f32 %v195, %v904
    %v906 = vpop.f32.mrf.mxu0
    %v907 = vadd.f32 %v191, %v906
    %v908 = vpop.f32.mrf.mxu0
    %v909 = vadd.f32 %v195, %v908
    %910 = vmatprep.mubr.bf16.mxu0 %v319
    %911 = vmatmul.mubr.bf16.gmra.mxu0 %v318
    %v912 = vpop.f32.mrf.mxu0
    %v913 = vadd.f32 %v191, %v912
    %v914 = vpop.f32.mrf.mxu0
    %v915 = vadd.f32 %v195, %v914
    %v916 = vpop.f32.mrf.mxu0
    %v917 = vadd.f32 %v191, %v916
    %v918 = vpop.f32.mrf.mxu0
    %v919 = vadd.f32 %v195, %v918
    %920 = vmatprep.mubr.bf16.mxu0 %v321
    %921 = vmatmul.mubr.bf16.gmra.mxu0 %v320
    %v922 = vpop.f32.mrf.mxu0
    %v923 = vadd.f32 %v191, %v922
    %v924 = vpop.f32.mrf.mxu0
    %v925 = vadd.f32 %v195, %v924
    %v926 = vpop.f32.mrf.mxu0
    %v927 = vadd.f32 %v191, %v926
    %v928 = vpop.f32.mrf.mxu0
    %v929 = vadd.f32 %v195, %v928
    %930 = vmatprep.mubr.bf16.mxu0 %v323
    %931 = vmatmul.mubr.bf16.gmra.mxu0 %v322
    %v932 = vpop.f32.mrf.mxu0
    %v933 = vadd.f32 %v191, %v932
    %v934 = vpop.f32.mrf.mxu0
    %v935 = vadd.f32 %v195, %v934
    %v936 = vpop.f32.mrf.mxu0
    %v937 = vadd.f32 %v191, %v936
    %v938 = vpop.f32.mrf.mxu0
    %v939 = vadd.f32 %v195, %v938
    %940 = vmatprep.mubr.bf16.mxu0 %v325
    %941 = vmatmul.mubr.bf16.gmra.mxu0 %v324
    %v942 = vpop.f32.mrf.mxu0
    %v943 = vadd.f32 %v191, %v942
    %v944 = vpop.f32.mrf.mxu0
    %v945 = vadd.f32 %v195, %v944
    %v946 = vpop.f32.mrf.mxu0
    %v947 = vadd.f32 %v191, %v946
    %v948 = vpop.f32.mrf.mxu0
    %v949 = vadd.f32 %v195, %v948
    %950 = vmatprep.mubr.bf16.mxu0 %v327
    %951 = vmatmul.mubr.bf16.gmra.mxu0 %v326
    %v952 = vpop.f32.mrf.mxu0
    %v953 = vadd.f32 %v191, %v952
    %v954 = vpop.f32.mrf.mxu0
    %v955 = vadd.f32 %v195, %v954
    %v956 = vpop.f32.mrf.mxu0
    %v957 = vadd.f32 %v191, %v956
    %v958 = vpop.f32.mrf.mxu0
    %v959 = vadd.f32 %v195, %v958
    %960 = vmatprep.mubr.bf16.mxu0 %v329
    %961 = vmatmul.mubr.bf16.gmra.mxu0 %v328
    %v962 = vpop.f32.mrf.mxu0
    %v963 = vadd.f32 %v191, %v962
    %v964 = vpop.f32.mrf.mxu0
    %v965 = vadd.f32 %v195, %v964
    %v966 = vpop.f32.mrf.mxu0
    %v967 = vadd.f32 %v191, %v966
    %v968 = vpop.f32.mrf.mxu0
    %v969 = vadd.f32 %v195, %v968
    %970 = vmatprep.mubr.bf16.mxu0 %v331
    %971 = vmatmul.mubr.bf16.gmra.mxu0 %v330
    %v972 = vpop.f32.mrf.mxu0
    %v973 = vadd.f32 %v191, %v972
    %v974 = vpop.f32.mrf.mxu0
    %v975 = vadd.f32 %v195, %v974
    %v976 = vpop.f32.mrf.mxu0
    %v977 = vadd.f32 %v191, %v976
    %v978 = vpop.f32.mrf.mxu0
    %v979 = vadd.f32 %v195, %v978
    %980 = vmatprep.mubr.bf16.mxu0 %v333
    %981 = vmatmul.mubr.bf16.gmra.mxu0 %v332
    %v982 = vpop.f32.mrf.mxu0
    %v983 = vadd.f32 %v191, %v982
    %v984 = vpop.f32.mrf.mxu0
    %v985 = vadd.f32 %v195, %v984
    %v986 = vpop.f32.mrf.mxu0
    %v987 = vadd.f32 %v191, %v986
    %v988 = vpop.f32.mrf.mxu0
    %v989 = vadd.f32 %v195, %v988
    %990 = vmatprep.mubr.bf16.mxu0 %v335
    %991 = vmatmul.mubr.bf16.gmra.mxu0 %v334
    %v992 = vpop.f32.mrf.mxu0
    %v993 = vadd.f32 %v191, %v992
    %v994 = vpop.f32.mrf.mxu0
    %v995 = vadd.f32 %v195, %v994
    %v996 = vpop.f32.mrf.mxu0
    %v997 = vadd.f32 %v191, %v996
    %v998 = vpop.f32.mrf.mxu0
    %v999 = vadd.f32 %v195, %v998
    %1000 = vmatprep.mubr.bf16.mxu0 %v337
    %1001 = vmatmul.mubr.bf16.gmra.mxu0 %v336
    %v1002 = vpop.f32.mrf.mxu0
    %v1003 = vadd.f32 %v191, %v1002
    %v1004 = vpop.f32.mrf.mxu0
    %v1005 = vadd.f32 %v195, %v1004
    %v1006 = vpop.f32.mrf.mxu0
    %v1007 = vadd.f32 %v191, %v1006
    %v1008 = vpop.f32.mrf.mxu0
    %v1009 = vadd.f32 %v195, %v1008
    %1010 = vmatprep.mubr.bf16.mxu0 %v339
    %1011 = vmatmul.mubr.bf16.gmra.mxu0 %v338
    %v1012 = vpop.f32.mrf.mxu0
    %v1013 = vadd.f32 %v191, %v1012
    %v1014 = vpop.f32.mrf.mxu0
    %v1015 = vadd.f32 %v195, %v1014
    %v1016 = vpop.f32.mrf.mxu0
    %v1017 = vadd.f32 %v191, %v1016
    %v1018 = vpop.f32.mrf.mxu0
    %v1019 = vadd.f32 %v195, %v1018
    %1020 = vmatprep.mubr.bf16.mxu0 %v341
    %1021 = vmatmul.mubr.bf16.gmra.mxu0 %v340
    %v1022 = vpop.f32.mrf.mxu0
    %v1023 = vadd.f32 %v191, %v1022
    %v1024 = vpop.f32.mrf.mxu0
    %v1025 = vadd.f32 %v195, %v1024
    %v1026 = vpop.f32.mrf.mxu0
    %v1027 = vadd.f32 %v191, %v1026
    %v1028 = vpop.f32.mrf.mxu0
    %v1029 = vadd.f32 %v195, %v1028
    %1030 = vmatprep.mubr.bf16.mxu0 %v343
    %1031 = vmatmul.mubr.bf16.gmra.mxu0 %v342
    %v1032 = vpop.f32.mrf.mxu0
    %v1033 = vadd.f32 %v191, %v1032
    %v1034 = vpop.f32.mrf.mxu0
    %v1035 = vadd.f32 %v195, %v1034
    %v1036 = vpop.f32.mrf.mxu0
    %v1037 = vadd.f32 %v191, %v1036
    %v1038 = vpop.f32.mrf.mxu0
    %v1039 = vadd.f32 %v195, %v1038
    %1040 = vmatprep.mubr.bf16.mxu0 %v345
    %1041 = vmatmul.mubr.bf16.gmra.mxu0 %v344
    %v1042 = vpop.f32.mrf.mxu0
    %v1043 = vadd.f32 %v191, %v1042
    %v1044 = vpop.f32.mrf.mxu0
    %v1045 = vadd.f32 %v195, %v1044
    %v1046 = vpop.f32.mrf.mxu0
    %v1047 = vadd.f32 %v191, %v1046
    %v1048 = vpop.f32.mrf.mxu0
    %v1049 = vadd.f32 %v195, %v1048
    %1050 = vdwg.mxu0
    %1051 = vmatprep.subr.bf16.mxu0 %v711
    %1052 = vmatpush1.bf16.msra.mxu0 %v710
    %1053 = vmatprep.subr.bf16.mxu0 %v705
    %1054 = vmatpush1.bf16.msra.mxu0 %v704
    %1055 = vmatprep.subr.bf16.mxu0 %v699
    %1056 = vmatpush1.bf16.msra.mxu0 %v698
    %1057 = vmatprep.subr.bf16.mxu0 %v693
    %1058 = vmatpush1.bf16.msra.mxu0 %v692
    %1059 = vmatprep.subr.bf16.mxu0 %v687
    %1060 = vmatpush1.bf16.msra.mxu0 %v686
    %1061 = vmatprep.subr.bf16.mxu0 %v681
    %1062 = vmatpush1.bf16.msra.mxu0 %v680
    %1063 = vmatprep.subr.bf16.mxu0 %v675
    %1064 = vmatpush1.bf16.msra.mxu0 %v674
    %1065 = vmatprep.subr.bf16.mxu0 %v669
    %1066 = vmatpush1.bf16.msra.mxu0 %v668
    %1067 = vmatprep.subr.bf16.mxu0 %v759
    %1068 = vmatpush2.bf16.msra.mxu0 %v758
    %1069 = vmatprep.subr.bf16.mxu0 %v753
    %1070 = vmatpush2.bf16.msra.mxu0 %v752
    %1071 = vmatprep.subr.bf16.mxu0 %v747
    %1072 = vmatpush2.bf16.msra.mxu0 %v746
    %1073 = vmatprep.subr.bf16.mxu0 %v741
    %1074 = vmatpush2.bf16.msra.mxu0 %v740
    %1075 = vmatprep.subr.bf16.mxu0 %v735
    %1076 = vmatpush2.bf16.msra.mxu0 %v734
    %1077 = vmatprep.subr.bf16.mxu0 %v729
    %1078 = vmatpush2.bf16.msra.mxu0 %v728
    %1079 = vmatprep.subr.bf16.mxu0 %v723
    %1080 = vmatpush2.bf16.msra.mxu0 %v722
    %1081 = vmatprep.subr.bf16.mxu0 %v717
    %1082 = vmatpush2.bf16.msra.mxu0 %v716
    %1083 = vmatprep.mubr.bf16.mxu0 %v315
    %1084 = vmatmul.mubr.bf16.gmra.mxu0 %v314
    %v1085 = vpop.f32.mrf.mxu0
    %v1086 = vadd.f32 %v199, %v1085
    %v1087 = vpop.f32.mrf.mxu0
    %v1088 = vadd.f32 %v203, %v1087
    %v1089 = vpop.f32.mrf.mxu0
    %v1090 = vadd.f32 %v199, %v1089
    %v1091 = vpop.f32.mrf.mxu0
    %v1092 = vadd.f32 %v203, %v1091
    %1093 = vmatprep.mubr.bf16.mxu0 %v317
    %1094 = vmatmul.mubr.bf16.gmra.mxu0 %v316
    %v1095 = vpop.f32.mrf.mxu0
    %v1096 = vadd.f32 %v199, %v1095
    %v1097 = vpop.f32.mrf.mxu0
    %v1098 = vadd.f32 %v203, %v1097
    %v1099 = vpop.f32.mrf.mxu0
    %v1100 = vadd.f32 %v199, %v1099
    %v1101 = vpop.f32.mrf.mxu0
    %v1102 = vadd.f32 %v203, %v1101
    %1103 = vmatprep.mubr.bf16.mxu0 %v319
    %1104 = vmatmul.mubr.bf16.gmra.mxu0 %v318
    %v1105 = vpop.f32.mrf.mxu0
    %v1106 = vadd.f32 %v199, %v1105
    %v1107 = vpop.f32.mrf.mxu0
    %v1108 = vadd.f32 %v203, %v1107
    %v1109 = vpop.f32.mrf.mxu0
    %v1110 = vadd.f32 %v199, %v1109
    %v1111 = vpop.f32.mrf.mxu0
    %v1112 = vadd.f32 %v203, %v1111
    %1113 = vmatprep.mubr.bf16.mxu0 %v321
    %1114 = vmatmul.mubr.bf16.gmra.mxu0 %v320
    %v1115 = vpop.f32.mrf.mxu0
    %v1116 = vadd.f32 %v199, %v1115
    %v1117 = vpop.f32.mrf.mxu0
    %v1118 = vadd.f32 %v203, %v1117
    %v1119 = vpop.f32.mrf.mxu0
    %v1120 = vadd.f32 %v199, %v1119
    %v1121 = vpop.f32.mrf.mxu0
    %v1122 = vadd.f32 %v203, %v1121
    %1123 = vmatprep.mubr.bf16.mxu0 %v323
    %1124 = vmatmul.mubr.bf16.gmra.mxu0 %v322
    %v1125 = vpop.f32.mrf.mxu0
    %v1126 = vadd.f32 %v199, %v1125
    %v1127 = vpop.f32.mrf.mxu0
    %v1128 = vadd.f32 %v203, %v1127
    %v1129 = vpop.f32.mrf.mxu0
    %v1130 = vadd.f32 %v199, %v1129
    %v1131 = vpop.f32.mrf.mxu0
    %v1132 = vadd.f32 %v203, %v1131
    %1133 = vmatprep.mubr.bf16.mxu0 %v325
    %1134 = vmatmul.mubr.bf16.gmra.mxu0 %v324
    %v1135 = vpop.f32.mrf.mxu0
    %v1136 = vadd.f32 %v199, %v1135
    %v1137 = vpop.f32.mrf.mxu0
    %v1138 = vadd.f32 %v203, %v1137
    %v1139 = vpop.f32.mrf.mxu0
    %v1140 = vadd.f32 %v199, %v1139
    %v1141 = vpop.f32.mrf.mxu0
    %v1142 = vadd.f32 %v203, %v1141
    %1143 = vmatprep.mubr.bf16.mxu0 %v327
    %1144 = vmatmul.mubr.bf16.gmra.mxu0 %v326
    %v1145 = vpop.f32.mrf.mxu0
    %v1146 = vadd.f32 %v199, %v1145
    %v1147 = vpop.f32.mrf.mxu0
    %v1148 = vadd.f32 %v203, %v1147
    %v1149 = vpop.f32.mrf.mxu0
    %v1150 = vadd.f32 %v199, %v1149
    %v1151 = vpop.f32.mrf.mxu0
    %v1152 = vadd.f32 %v203, %v1151
    %1153 = vmatprep.mubr.bf16.mxu0 %v329
    %1154 = vmatmul.mubr.bf16.gmra.mxu0 %v328
    %v1155 = vpop.f32.mrf.mxu0
    %v1156 = vadd.f32 %v199, %v1155
    %v1157 = vpop.f32.mrf.mxu0
    %v1158 = vadd.f32 %v203, %v1157
    %v1159 = vpop.f32.mrf.mxu0
    %v1160 = vadd.f32 %v199, %v1159
    %v1161 = vpop.f32.mrf.mxu0
    %v1162 = vadd.f32 %v203, %v1161
    %1163 = vmatprep.mubr.bf16.mxu0 %v331
    %1164 = vmatmul.mubr.bf16.gmra.mxu0 %v330
    %v1165 = vpop.f32.mrf.mxu0
    %v1166 = vadd.f32 %v199, %v1165
    %v1167 = vpop.f32.mrf.mxu0
    %v1168 = vadd.f32 %v203, %v1167
    %v1169 = vpop.f32.mrf.mxu0
    %v1170 = vadd.f32 %v199, %v1169
    %v1171 = vpop.f32.mrf.mxu0
    %v1172 = vadd.f32 %v203, %v1171
    %1173 = vmatprep.mubr.bf16.mxu0 %v333
    %1174 = vmatmul.mubr.bf16.gmra.mxu0 %v332
    %v1175 = vpop.f32.mrf.mxu0
    %v1176 = vadd.f32 %v199, %v1175
    %v1177 = vpop.f32.mrf.mxu0
    %v1178 = vadd.f32 %v203, %v1177
    %v1179 = vpop.f32.mrf.mxu0
    %v1180 = vadd.f32 %v199, %v1179
    %v1181 = vpop.f32.mrf.mxu0
    %v1182 = vadd.f32 %v203, %v1181
    %1183 = vmatprep.mubr.bf16.mxu0 %v335
    %1184 = vmatmul.mubr.bf16.gmra.mxu0 %v334
    %v1185 = vpop.f32.mrf.mxu0
    %v1186 = vadd.f32 %v199, %v1185
    %v1187 = vpop.f32.mrf.mxu0
    %v1188 = vadd.f32 %v203, %v1187
    %v1189 = vpop.f32.mrf.mxu0
    %v1190 = vadd.f32 %v199, %v1189
    %v1191 = vpop.f32.mrf.mxu0
    %v1192 = vadd.f32 %v203, %v1191
    %1193 = vmatprep.mubr.bf16.mxu0 %v337
    %1194 = vmatmul.mubr.bf16.gmra.mxu0 %v336
    %v1195 = vpop.f32.mrf.mxu0
    %v1196 = vadd.f32 %v199, %v1195
    %v1197 = vpop.f32.mrf.mxu0
    %v1198 = vadd.f32 %v203, %v1197
    %v1199 = vpop.f32.mrf.mxu0
    %v1200 = vadd.f32 %v199, %v1199
    %v1201 = vpop.f32.mrf.mxu0
    %v1202 = vadd.f32 %v203, %v1201
    %1203 = vmatprep.mubr.bf16.mxu0 %v339
    %1204 = vmatmul.mubr.bf16.gmra.mxu0 %v338
    %v1205 = vpop.f32.mrf.mxu0
    %v1206 = vadd.f32 %v199, %v1205
    %v1207 = vpop.f32.mrf.mxu0
    %v1208 = vadd.f32 %v203, %v1207
    %v1209 = vpop.f32.mrf.mxu0
    %v1210 = vadd.f32 %v199, %v1209
    %v1211 = vpop.f32.mrf.mxu0
    %v1212 = vadd.f32 %v203, %v1211
    %1213 = vmatprep.mubr.bf16.mxu0 %v341
    %1214 = vmatmul.mubr.bf16.gmra.mxu0 %v340
    %v1215 = vpop.f32.mrf.mxu0
    %v1216 = vadd.f32 %v199, %v1215
    %v1217 = vpop.f32.mrf.mxu0
    %v1218 = vadd.f32 %v203, %v1217
    %v1219 = vpop.f32.mrf.mxu0
    %v1220 = vadd.f32 %v199, %v1219
    %v1221 = vpop.f32.mrf.mxu0
    %v1222 = vadd.f32 %v203, %v1221
    %1223 = vmatprep.mubr.bf16.mxu0 %v343
    %1224 = vmatmul.mubr.bf16.gmra.mxu0 %v342
    %v1225 = vpop.f32.mrf.mxu0
    %v1226 = vadd.f32 %v199, %v1225
    %v1227 = vpop.f32.mrf.mxu0
    %v1228 = vadd.f32 %v203, %v1227
    %v1229 = vpop.f32.mrf.mxu0
    %v1230 = vadd.f32 %v199, %v1229
    %v1231 = vpop.f32.mrf.mxu0
    %v1232 = vadd.f32 %v203, %v1231
    %1233 = vmatprep.mubr.bf16.mxu0 %v345
    %1234 = vmatmul.mubr.bf16.gmra.mxu0 %v344
    %v1235 = vpop.f32.mrf.mxu0
    %v1236 = vadd.f32 %v199, %v1235
    %v1237 = vpop.f32.mrf.mxu0
    %v1238 = vadd.f32 %v203, %v1237
    %v1239 = vpop.f32.mrf.mxu0
    %v1240 = vadd.f32 %v199, %v1239
    %v1241 = vpop.f32.mrf.mxu0
    %v1242 = vadd.f32 %v203, %v1241
    %1243 = vdwg.mxu0
    %1244 = vmatprep.subr.bf16.mxu0 %v713
    %1245 = vmatpush1.bf16.msra.mxu0 %v712
    %1246 = vmatprep.subr.bf16.mxu0 %v707
    %1247 = vmatpush1.bf16.msra.mxu0 %v706
    %1248 = vmatprep.subr.bf16.mxu0 %v701
    %1249 = vmatpush1.bf16.msra.mxu0 %v700
    %1250 = vmatprep.subr.bf16.mxu0 %v695
    %1251 = vmatpush1.bf16.msra.mxu0 %v694
    %1252 = vmatprep.subr.bf16.mxu0 %v689
    %1253 = vmatpush1.bf16.msra.mxu0 %v688
    %1254 = vmatprep.subr.bf16.mxu0 %v683
    %1255 = vmatpush1.bf16.msra.mxu0 %v682
    %1256 = vmatprep.subr.bf16.mxu0 %v677
    %1257 = vmatpush1.bf16.msra.mxu0 %v676
    %1258 = vmatprep.subr.bf16.mxu0 %v671
    %1259 = vmatpush1.bf16.msra.mxu0 %v670
    %1260 = vmatprep.subr.bf16.mxu0 %v761
    %1261 = vmatpush2.bf16.msra.mxu0 %v760
    %1262 = vmatprep.subr.bf16.mxu0 %v755
    %1263 = vmatpush2.bf16.msra.mxu0 %v754
    %1264 = vmatprep.subr.bf16.mxu0 %v749
    %1265 = vmatpush2.bf16.msra.mxu0 %v748
    %1266 = vmatprep.subr.bf16.mxu0 %v743
    %1267 = vmatpush2.bf16.msra.mxu0 %v742
    %1268 = vmatprep.subr.bf16.mxu0 %v737
    %1269 = vmatpush2.bf16.msra.mxu0 %v736
    %1270 = vmatprep.subr.bf16.mxu0 %v731
    %1271 = vmatpush2.bf16.msra.mxu0 %v730
    %1272 = vmatprep.subr.bf16.mxu0 %v725
    %1273 = vmatpush2.bf16.msra.mxu0 %v724
    %1274 = vmatprep.subr.bf16.mxu0 %v719
    %1275 = vmatpush2.bf16.msra.mxu0 %v718
    %1276 = vmatprep.mubr.bf16.mxu0 %v315
    %1277 = vmatmul.mubr.bf16.gmra.mxu0 %v314
    %v1278 = vpop.f32.mrf.mxu0
    %v1279 = vadd.f32 %v207, %v1278
    %v1280 = vpop.f32.mrf.mxu0
    %v1281 = vadd.f32 %v211, %v1280
    %v1282 = vpop.f32.mrf.mxu0
    %v1283 = vadd.f32 %v207, %v1282
    %v1284 = vpop.f32.mrf.mxu0
    %v1285 = vadd.f32 %v211, %v1284
    %1286 = vmatprep.mubr.bf16.mxu0 %v317
    %1287 = vmatmul.mubr.bf16.gmra.mxu0 %v316
    %v1288 = vpop.f32.mrf.mxu0
    %v1289 = vadd.f32 %v207, %v1288
    %v1290 = vpop.f32.mrf.mxu0
    %v1291 = vadd.f32 %v211, %v1290
    %v1292 = vpop.f32.mrf.mxu0
    %v1293 = vadd.f32 %v207, %v1292
    %v1294 = vpop.f32.mrf.mxu0
    %v1295 = vadd.f32 %v211, %v1294
    %1296 = vmatprep.mubr.bf16.mxu0 %v319
    %1297 = vmatmul.mubr.bf16.gmra.mxu0 %v318
    %v1298 = vpop.f32.mrf.mxu0
    %v1299 = vadd.f32 %v207, %v1298
    %v1300 = vpop.f32.mrf.mxu0
    %v1301 = vadd.f32 %v211, %v1300
    %v1302 = vpop.f32.mrf.mxu0
    %v1303 = vadd.f32 %v207, %v1302
    %v1304 = vpop.f32.mrf.mxu0
    %v1305 = vadd.f32 %v211, %v1304
    %1306 = vmatprep.mubr.bf16.mxu0 %v321
    %1307 = vmatmul.mubr.bf16.gmra.mxu0 %v320
    %v1308 = vpop.f32.mrf.mxu0
    %v1309 = vadd.f32 %v207, %v1308
    %v1310 = vpop.f32.mrf.mxu0
    %v1311 = vadd.f32 %v211, %v1310
    %v1312 = vpop.f32.mrf.mxu0
    %v1313 = vadd.f32 %v207, %v1312
    %v1314 = vpop.f32.mrf.mxu0
    %v1315 = vadd.f32 %v211, %v1314
    %1316 = vmatprep.mubr.bf16.mxu0 %v323
    %1317 = vmatmul.mubr.bf16.gmra.mxu0 %v322
    %v1318 = vpop.f32.mrf.mxu0
    %v1319 = vadd.f32 %v207, %v1318
    %v1320 = vpop.f32.mrf.mxu0
    %v1321 = vadd.f32 %v211, %v1320
    %v1322 = vpop.f32.mrf.mxu0
    %v1323 = vadd.f32 %v207, %v1322
    %v1324 = vpop.f32.mrf.mxu0
    %v1325 = vadd.f32 %v211, %v1324
    %1326 = vmatprep.mubr.bf16.mxu0 %v325
    %1327 = vmatmul.mubr.bf16.gmra.mxu0 %v324
    %v1328 = vpop.f32.mrf.mxu0
    %v1329 = vadd.f32 %v207, %v1328
    %v1330 = vpop.f32.mrf.mxu0
    %v1331 = vadd.f32 %v211, %v1330
    %v1332 = vpop.f32.mrf.mxu0
    %v1333 = vadd.f32 %v207, %v1332
    %v1334 = vpop.f32.mrf.mxu0
    %v1335 = vadd.f32 %v211, %v1334
    %1336 = vmatprep.mubr.bf16.mxu0 %v327
    %1337 = vmatmul.mubr.bf16.gmra.mxu0 %v326
    %v1338 = vpop.f32.mrf.mxu0
    %v1339 = vadd.f32 %v207, %v1338
    %v1340 = vpop.f32.mrf.mxu0
    %v1341 = vadd.f32 %v211, %v1340
    %v1342 = vpop.f32.mrf.mxu0
    %v1343 = vadd.f32 %v207, %v1342
    %v1344 = vpop.f32.mrf.mxu0
    %v1345 = vadd.f32 %v211, %v1344
    %1346 = vmatprep.mubr.bf16.mxu0 %v329
    %1347 = vmatmul.mubr.bf16.gmra.mxu0 %v328
    %v1348 = vpop.f32.mrf.mxu0
    %v1349 = vadd.f32 %v207, %v1348
    %v1350 = vpop.f32.mrf.mxu0
    %v1351 = vadd.f32 %v211, %v1350
    %v1352 = vpop.f32.mrf.mxu0
    %v1353 = vadd.f32 %v207, %v1352
    %v1354 = vpop.f32.mrf.mxu0
    %v1355 = vadd.f32 %v211, %v1354
    %1356 = vmatprep.mubr.bf16.mxu0 %v331
    %1357 = vmatmul.mubr.bf16.gmra.mxu0 %v330
    %v1358 = vpop.f32.mrf.mxu0
    %v1359 = vadd.f32 %v207, %v1358
    %v1360 = vpop.f32.mrf.mxu0
    %v1361 = vadd.f32 %v211, %v1360
    %v1362 = vpop.f32.mrf.mxu0
    %v1363 = vadd.f32 %v207, %v1362
    %v1364 = vpop.f32.mrf.mxu0
    %v1365 = vadd.f32 %v211, %v1364
    %1366 = vmatprep.mubr.bf16.mxu0 %v333
    %1367 = vmatmul.mubr.bf16.gmra.mxu0 %v332
    %v1368 = vpop.f32.mrf.mxu0
    %v1369 = vadd.f32 %v207, %v1368
    %v1370 = vpop.f32.mrf.mxu0
    %v1371 = vadd.f32 %v211, %v1370
    %v1372 = vpop.f32.mrf.mxu0
    %v1373 = vadd.f32 %v207, %v1372
    %v1374 = vpop.f32.mrf.mxu0
    %v1375 = vadd.f32 %v211, %v1374
    %1376 = vmatprep.mubr.bf16.mxu0 %v335
    %1377 = vmatmul.mubr.bf16.gmra.mxu0 %v334
    %v1378 = vpop.f32.mrf.mxu0
    %v1379 = vadd.f32 %v207, %v1378
    %v1380 = vpop.f32.mrf.mxu0
    %v1381 = vadd.f32 %v211, %v1380
    %v1382 = vpop.f32.mrf.mxu0
    %v1383 = vadd.f32 %v207, %v1382
    %v1384 = vpop.f32.mrf.mxu0
    %v1385 = vadd.f32 %v211, %v1384
    %1386 = vmatprep.mubr.bf16.mxu0 %v337
    %1387 = vmatmul.mubr.bf16.gmra.mxu0 %v336
    %v1388 = vpop.f32.mrf.mxu0
    %v1389 = vadd.f32 %v207, %v1388
    %v1390 = vpop.f32.mrf.mxu0
    %v1391 = vadd.f32 %v211, %v1390
    %v1392 = vpop.f32.mrf.mxu0
    %v1393 = vadd.f32 %v207, %v1392
    %v1394 = vpop.f32.mrf.mxu0
    %v1395 = vadd.f32 %v211, %v1394
    %1396 = vmatprep.mubr.bf16.mxu0 %v339
    %1397 = vmatmul.mubr.bf16.gmra.mxu0 %v338
    %v1398 = vpop.f32.mrf.mxu0
    %v1399 = vadd.f32 %v207, %v1398
    %v1400 = vpop.f32.mrf.mxu0
    %v1401 = vadd.f32 %v211, %v1400
    %v1402 = vpop.f32.mrf.mxu0
    %v1403 = vadd.f32 %v207, %v1402
    %v1404 = vpop.f32.mrf.mxu0
    %v1405 = vadd.f32 %v211, %v1404
    %1406 = vmatprep.mubr.bf16.mxu0 %v341
    %1407 = vmatmul.mubr.bf16.gmra.mxu0 %v340
    %v1408 = vpop.f32.mrf.mxu0
    %v1409 = vadd.f32 %v207, %v1408
    %v1410 = vpop.f32.mrf.mxu0
    %v1411 = vadd.f32 %v211, %v1410
    %v1412 = vpop.f32.mrf.mxu0
    %v1413 = vadd.f32 %v207, %v1412
    %v1414 = vpop.f32.mrf.mxu0
    %v1415 = vadd.f32 %v211, %v1414
    %1416 = vmatprep.mubr.bf16.mxu0 %v343
    %1417 = vmatmul.mubr.bf16.gmra.mxu0 %v342
    %v1418 = vpop.f32.mrf.mxu0
    %v1419 = vadd.f32 %v207, %v1418
    %v1420 = vpop.f32.mrf.mxu0
    %v1421 = vadd.f32 %v211, %v1420
    %v1422 = vpop.f32.mrf.mxu0
    %v1423 = vadd.f32 %v207, %v1422
    %v1424 = vpop.f32.mrf.mxu0
    %v1425 = vadd.f32 %v211, %v1424
    %1426 = vmatprep.mubr.bf16.mxu0 %v345
    %1427 = vmatmul.mubr.bf16.gmra.mxu0 %v344
    %v1428 = vpop.f32.mrf.mxu0
    %v1429 = vadd.f32 %v207, %v1428
    %v1430 = vpop.f32.mrf.mxu0
    %v1431 = vadd.f32 %v211, %v1430
    %v1432 = vpop.f32.mrf.mxu0
    %v1433 = vadd.f32 %v207, %v1432
    %v1434 = vpop.f32.mrf.mxu0
    %v1435 = vadd.f32 %v211, %v1434
    %1436 = vdwg.mxu0
    %v1437 = vpack.c.bf16 %v897, %v893
    %v1438 = vpack.c.bf16 %v899, %v895
    %v1439 = vpack.c.bf16 %v1090, %v1086
    %v1440 = vpack.c.bf16 %v1092, %v1088
    %v1441 = vpack.c.bf16 %v1283, %v1279
    %v1442 = vpack.c.bf16 %v1285, %v1281
    %v1443 = vpack.c.bf16 %v907, %v903
    %v1444 = vpack.c.bf16 %v909, %v905
    %v1445 = vpack.c.bf16 %v1100, %v1096
    %v1446 = vpack.c.bf16 %v1102, %v1098
    %v1447 = vpack.c.bf16 %v1293, %v1289
    %v1448 = vpack.c.bf16 %v1295, %v1291
    %v1449 = vpack.c.bf16 %v917, %v913
    %v1450 = vpack.c.bf16 %v919, %v915
    %v1451 = vpack.c.bf16 %v1110, %v1106
    %v1452 = vpack.c.bf16 %v1112, %v1108
    %v1453 = vpack.c.bf16 %v1303, %v1299
    %v1454 = vpack.c.bf16 %v1305, %v1301
    %v1455 = vpack.c.bf16 %v927, %v923
    %v1456 = vpack.c.bf16 %v929, %v925
    %v1457 = vpack.c.bf16 %v1120, %v1116
    %v1458 = vpack.c.bf16 %v1122, %v1118
    %v1459 = vpack.c.bf16 %v1313, %v1309
    %v1460 = vpack.c.bf16 %v1315, %v1311
    %v1461 = vpack.c.bf16 %v937, %v933
    %v1462 = vpack.c.bf16 %v939, %v935
    %v1463 = vpack.c.bf16 %v1130, %v1126
    %v1464 = vpack.c.bf16 %v1132, %v1128
    %v1465 = vpack.c.bf16 %v1323, %v1319
    %v1466 = vpack.c.bf16 %v1325, %v1321
    %v1467 = vpack.c.bf16 %v947, %v943
    %v1468 = vpack.c.bf16 %v949, %v945
    %v1469 = vpack.c.bf16 %v1140, %v1136
    %v1470 = vpack.c.bf16 %v1142, %v1138
    %v1471 = vpack.c.bf16 %v1333, %v1329
    %v1472 = vpack.c.bf16 %v1335, %v1331
    %v1473 = vpack.c.bf16 %v957, %v953
    %v1474 = vpack.c.bf16 %v959, %v955
    %v1475 = vpack.c.bf16 %v1150, %v1146
    %v1476 = vpack.c.bf16 %v1152, %v1148
    %v1477 = vpack.c.bf16 %v1343, %v1339
    %v1478 = vpack.c.bf16 %v1345, %v1341
    %v1479 = vpack.c.bf16 %v967, %v963
    %v1480 = vpack.c.bf16 %v969, %v965
    %v1481 = vpack.c.bf16 %v1160, %v1156
    %v1482 = vpack.c.bf16 %v1162, %v1158
    %v1483 = vpack.c.bf16 %v1353, %v1349
    %v1484 = vpack.c.bf16 %v1355, %v1351
    %v1485 = vpack.c.bf16 %v977, %v973
    %v1486 = vpack.c.bf16 %v979, %v975
    %v1487 = vpack.c.bf16 %v1170, %v1166
    %v1488 = vpack.c.bf16 %v1172, %v1168
    %v1489 = vpack.c.bf16 %v1363, %v1359
    %v1490 = vpack.c.bf16 %v1365, %v1361
    %v1491 = vpack.c.bf16 %v987, %v983
    %v1492 = vpack.c.bf16 %v989, %v985
    %v1493 = vpack.c.bf16 %v1180, %v1176
    %v1494 = vpack.c.bf16 %v1182, %v1178
    %v1495 = vpack.c.bf16 %v1373, %v1369
    %v1496 = vpack.c.bf16 %v1375, %v1371
    %v1497 = vpack.c.bf16 %v997, %v993
    %v1498 = vpack.c.bf16 %v999, %v995
    %v1499 = vpack.c.bf16 %v1190, %v1186
    %v1500 = vpack.c.bf16 %v1192, %v1188
    %v1501 = vpack.c.bf16 %v1383, %v1379
    %v1502 = vpack.c.bf16 %v1385, %v1381
    %v1503 = vpack.c.bf16 %v1007, %v1003
    %v1504 = vpack.c.bf16 %v1009, %v1005
    %v1505 = vpack.c.bf16 %v1200, %v1196
    %v1506 = vpack.c.bf16 %v1202, %v1198
    %v1507 = vpack.c.bf16 %v1393, %v1389
    %v1508 = vpack.c.bf16 %v1395, %v1391
    %v1509 = vpack.c.bf16 %v1017, %v1013
    %v1510 = vpack.c.bf16 %v1019, %v1015
    %v1511 = vpack.c.bf16 %v1210, %v1206
    %v1512 = vpack.c.bf16 %v1212, %v1208
    %v1513 = vpack.c.bf16 %v1403, %v1399
    %v1514 = vpack.c.bf16 %v1405, %v1401
    %v1515 = vpack.c.bf16 %v1027, %v1023
    %v1516 = vpack.c.bf16 %v1029, %v1025
    %v1517 = vpack.c.bf16 %v1220, %v1216
    %v1518 = vpack.c.bf16 %v1222, %v1218
    %v1519 = vpack.c.bf16 %v1413, %v1409
    %v1520 = vpack.c.bf16 %v1415, %v1411
    %v1521 = vpack.c.bf16 %v1037, %v1033
    %v1522 = vpack.c.bf16 %v1039, %v1035
    %v1523 = vpack.c.bf16 %v1230, %v1226
    %v1524 = vpack.c.bf16 %v1232, %v1228
    %v1525 = vpack.c.bf16 %v1423, %v1419
    %v1526 = vpack.c.bf16 %v1425, %v1421
    %v1527 = vpack.c.bf16 %v1047, %v1043
    %v1528 = vpack.c.bf16 %v1049, %v1045
    %v1529 = vpack.c.bf16 %v1240, %v1236
    %v1530 = vpack.c.bf16 %v1242, %v1238
    %v1531 = vpack.c.bf16 %v1433, %v1429
    %v1532 = vpack.c.bf16 %v1435, %v1431
    %v1565 = vunpack.c.l.b16 %v1437
    %v1566 = vunpack.c.l.b16 %v1438
    %v1567 = vunpack.c.h.b16 %v1437
    %v1568 = vunpack.c.h.b16 %v1438
    %v1569 = vunpack.c.l.b16 %v1443
    %v1570 = vunpack.c.l.b16 %v1444
    %v1571 = vunpack.c.h.b16 %v1443
    %v1572 = vunpack.c.h.b16 %v1444
    %v1573 = vunpack.c.l.b16 %v1449
    %v1574 = vunpack.c.l.b16 %v1450
    %v1575 = vunpack.c.h.b16 %v1449
    %v1576 = vunpack.c.h.b16 %v1450
    %v1577 = vunpack.c.l.b16 %v1455
    %v1578 = vunpack.c.l.b16 %v1456
    %v1579 = vunpack.c.h.b16 %v1455
    %v1580 = vunpack.c.h.b16 %v1456
    %v1581 = vunpack.c.l.b16 %v1461
    %v1582 = vunpack.c.l.b16 %v1462
    %v1583 = vunpack.c.h.b16 %v1461
    %v1584 = vunpack.c.h.b16 %v1462
    %v1585 = vunpack.c.l.b16 %v1467
    %v1586 = vunpack.c.l.b16 %v1468
    %v1587 = vunpack.c.h.b16 %v1467
    %v1588 = vunpack.c.h.b16 %v1468
    %v1589 = vunpack.c.l.b16 %v1473
    %v1590 = vunpack.c.l.b16 %v1474
    %v1591 = vunpack.c.h.b16 %v1473
    %v1592 = vunpack.c.h.b16 %v1474
    %v1593 = vunpack.c.l.b16 %v1479
    %v1594 = vunpack.c.l.b16 %v1480
    %v1595 = vunpack.c.h.b16 %v1479
    %v1596 = vunpack.c.h.b16 %v1480
    %v1597 = vunpack.c.l.b16 %v1485
    %v1598 = vunpack.c.l.b16 %v1486
    %v1599 = vunpack.c.h.b16 %v1485
    %v1600 = vunpack.c.h.b16 %v1486
    %v1601 = vunpack.c.l.b16 %v1491
    %v1602 = vunpack.c.l.b16 %v1492
    %v1603 = vunpack.c.h.b16 %v1491
    %v1604 = vunpack.c.h.b16 %v1492
    %v1605 = vunpack.c.l.b16 %v1497
    %v1606 = vunpack.c.l.b16 %v1498
    %v1607 = vunpack.c.h.b16 %v1497
    %v1608 = vunpack.c.h.b16 %v1498
    %v1609 = vunpack.c.l.b16 %v1503
    %v1610 = vunpack.c.l.b16 %v1504
    %v1611 = vunpack.c.h.b16 %v1503
    %v1612 = vunpack.c.h.b16 %v1504
    %v1613 = vunpack.c.l.b16 %v1509
    %v1614 = vunpack.c.l.b16 %v1510
    %v1615 = vunpack.c.h.b16 %v1509
    %v1616 = vunpack.c.h.b16 %v1510
    %v1617 = vunpack.c.l.b16 %v1515
    %v1618 = vunpack.c.l.b16 %v1516
    %v1619 = vunpack.c.h.b16 %v1515
    %v1620 = vunpack.c.h.b16 %v1516
    %v1621 = vunpack.c.l.b16 %v1521
    %v1622 = vunpack.c.l.b16 %v1522
    %v1623 = vunpack.c.h.b16 %v1521
    %v1624 = vunpack.c.h.b16 %v1522
    %v1625 = vunpack.c.l.b16 %v1527
    %v1626 = vunpack.c.l.b16 %v1528
    %v1627 = vunpack.c.h.b16 %v1527
    %v1628 = vunpack.c.h.b16 %v1528
    %v1629 = vpack.c.b16 %v1566, %v1565
    %v1630 = vpack.c.b16 %v1568, %v1567
    %v1631 = vpack.c.b16 %v1570, %v1569
    %v1632 = vpack.c.b16 %v1572, %v1571
    %v1633 = vpack.c.b16 %v1574, %v1573
    %v1634 = vpack.c.b16 %v1576, %v1575
    %v1635 = vpack.c.b16 %v1578, %v1577
    %v1636 = vpack.c.b16 %v1580, %v1579
    %v1637 = vpack.c.b16 %v1582, %v1581
    %v1638 = vpack.c.b16 %v1584, %v1583
    %v1639 = vpack.c.b16 %v1586, %v1585
    %v1640 = vpack.c.b16 %v1588, %v1587
    %v1641 = vpack.c.b16 %v1590, %v1589
    %v1642 = vpack.c.b16 %v1592, %v1591
    %v1643 = vpack.c.b16 %v1594, %v1593
    %v1644 = vpack.c.b16 %v1596, %v1595
    %v1645 = vpack.c.b16 %v1598, %v1597
    %v1646 = vpack.c.b16 %v1600, %v1599
    %v1647 = vpack.c.b16 %v1602, %v1601
    %v1648 = vpack.c.b16 %v1604, %v1603
    %v1649 = vpack.c.b16 %v1606, %v1605
    %v1650 = vpack.c.b16 %v1608, %v1607
    %v1651 = vpack.c.b16 %v1610, %v1609
    %v1652 = vpack.c.b16 %v1612, %v1611
    %v1653 = vpack.c.b16 %v1614, %v1613
    %v1654 = vpack.c.b16 %v1616, %v1615
    %v1655 = vpack.c.b16 %v1618, %v1617
    %v1656 = vpack.c.b16 %v1620, %v1619
    %v1657 = vpack.c.b16 %v1622, %v1621
    %v1658 = vpack.c.b16 %v1624, %v1623
    %v1659 = vpack.c.b16 %v1626, %v1625
    %v1660 = vpack.c.b16 %v1628, %v1627
    %1693 = vst [vmem:[#allocation8] sm:$0xff] %v1629
    %1694 = vst [vmem:[#allocation8 + $0x8] sm:$0xff] %v1630
    %1695 = vst [vmem:[#allocation8 + $0x10] sm:$0xff] %v1631
    %1696 = vst [vmem:[#allocation8 + $0x18] sm:$0xff] %v1632
    %1697 = vst [vmem:[#allocation8 + $0x20] sm:$0xff] %v1633
    %1698 = vst [vmem:[#allocation8 + $0x28] sm:$0xff] %v1634
    %1699 = vst [vmem:[#allocation8 + $0x30] sm:$0xff] %v1635
    %1700 = vst [vmem:[#allocation8 + $0x38] sm:$0xff] %v1636
    %1701 = vst [vmem:[#allocation8 + $0x40] sm:$0xff] %v1637
    %1702 = vst [vmem:[#allocation8 + $0x48] sm:$0xff] %v1638
    %1703 = vst [vmem:[#allocation8 + $0x50] sm:$0xff] %v1639
    %1704 = vst [vmem:[#allocation8 + $0x58] sm:$0xff] %v1640
    %1705 = vst [vmem:[#allocation8 + $0x60] sm:$0xff] %v1641
    %1706 = vst [vmem:[#allocation8 + $0x68] sm:$0xff] %v1642
    %1707 = vst [vmem:[#allocation8 + $0x70] sm:$0xff] %v1643
    %1708 = vst [vmem:[#allocation8 + $0x78] sm:$0xff] %v1644
    %1709 = vst [vmem:[#allocation8 + $0x80] sm:$0xff] %v1645
    %1710 = vst [vmem:[#allocation8 + $0x88] sm:$0xff] %v1646
    %1711 = vst [vmem:[#allocation8 + $0x90] sm:$0xff] %v1647
    %1712 = vst [vmem:[#allocation8 + $0x98] sm:$0xff] %v1648
    %1713 = vst [vmem:[#allocation8 + $0xa0] sm:$0xff] %v1649
    %1714 = vst [vmem:[#allocation8 + $0xa8] sm:$0xff] %v1650
    %1715 = vst [vmem:[#allocation8 + $0xb0] sm:$0xff] %v1651
    %1716 = vst [vmem:[#allocation8 + $0xb8] sm:$0xff] %v1652
    %1717 = vst [vmem:[#allocation8 + $0xc0] sm:$0xff] %v1653
    %1718 = vst [vmem:[#allocation8 + $0xc8] sm:$0xff] %v1654
    %1719 = vst [vmem:[#allocation8 + $0xd0] sm:$0xff] %v1655
    %1720 = vst [vmem:[#allocation8 + $0xd8] sm:$0xff] %v1656
    %1721 = vst [vmem:[#allocation8 + $0xe0] sm:$0xff] %v1657
    %1722 = vst [vmem:[#allocation8 + $0xe8] sm:$0xff] %v1658
    %1723 = vst [vmem:[#allocation8 + $0xf0] sm:$0xff] %v1659
    %1724 = vst [vmem:[#allocation8 + $0xf8] sm:$0xff] %v1660
    %v1757 = vunpack.c.l.b16 %v1439
    %v1758 = vunpack.c.l.b16 %v1440
    %v1759 = vunpack.c.h.b16 %v1439
    %v1760 = vunpack.c.h.b16 %v1440
    %v1761 = vunpack.c.l.b16 %v1445
    %v1762 = vunpack.c.l.b16 %v1446
    %v1763 = vunpack.c.h.b16 %v1445
    %v1764 = vunpack.c.h.b16 %v1446
    %v1765 = vunpack.c.l.b16 %v1451
    %v1766 = vunpack.c.l.b16 %v1452
    %v1767 = vunpack.c.h.b16 %v1451
    %v1768 = vunpack.c.h.b16 %v1452
    %v1769 = vunpack.c.l.b16 %v1457
    %v1770 = vunpack.c.l.b16 %v1458
    %v1771 = vunpack.c.h.b16 %v1457
    %v1772 = vunpack.c.h.b16 %v1458
    %v1773 = vunpack.c.l.b16 %v1463
    %v1774 = vunpack.c.l.b16 %v1464
    %v1775 = vunpack.c.h.b16 %v1463
    %v1776 = vunpack.c.h.b16 %v1464
    %v1777 = vunpack.c.l.b16 %v1469
    %v1778 = vunpack.c.l.b16 %v1470
    %v1779 = vunpack.c.h.b16 %v1469
    %v1780 = vunpack.c.h.b16 %v1470
    %v1781 = vunpack.c.l.b16 %v1475
    %v1782 = vunpack.c.l.b16 %v1476
    %v1783 = vunpack.c.h.b16 %v1475
    %v1784 = vunpack.c.h.b16 %v1476
    %v1785 = vunpack.c.l.b16 %v1481
    %v1786 = vunpack.c.l.b16 %v1482
    %v1787 = vunpack.c.h.b16 %v1481
    %v1788 = vunpack.c.h.b16 %v1482
    %v1789 = vunpack.c.l.b16 %v1487
    %v1790 = vunpack.c.l.b16 %v1488
    %v1791 = vunpack.c.h.b16 %v1487
    %v1792 = vunpack.c.h.b16 %v1488
    %v1793 = vunpack.c.l.b16 %v1493
    %v1794 = vunpack.c.l.b16 %v1494
    %v1795 = vunpack.c.h.b16 %v1493
    %v1796 = vunpack.c.h.b16 %v1494
    %v1797 = vunpack.c.l.b16 %v1499
    %v1798 = vunpack.c.l.b16 %v1500
    %v1799 = vunpack.c.h.b16 %v1499
    %v1800 = vunpack.c.h.b16 %v1500
    %v1801 = vunpack.c.l.b16 %v1505
    %v1802 = vunpack.c.l.b16 %v1506
    %v1803 = vunpack.c.h.b16 %v1505
    %v1804 = vunpack.c.h.b16 %v1506
    %v1805 = vunpack.c.l.b16 %v1511
    %v1806 = vunpack.c.l.b16 %v1512
    %v1807 = vunpack.c.h.b16 %v1511
    %v1808 = vunpack.c.h.b16 %v1512
    %v1809 = vunpack.c.l.b16 %v1517
    %v1810 = vunpack.c.l.b16 %v1518
    %v1811 = vunpack.c.h.b16 %v1517
    %v1812 = vunpack.c.h.b16 %v1518
    %v1813 = vunpack.c.l.b16 %v1523
    %v1814 = vunpack.c.l.b16 %v1524
    %v1815 = vunpack.c.h.b16 %v1523
    %v1816 = vunpack.c.h.b16 %v1524
    %v1817 = vunpack.c.l.b16 %v1529
    %v1818 = vunpack.c.l.b16 %v1530
    %v1819 = vunpack.c.h.b16 %v1529
    %v1820 = vunpack.c.h.b16 %v1530
    %v1821 = vpack.c.b16 %v1758, %v1757
    %v1822 = vpack.c.b16 %v1760, %v1759
    %v1823 = vpack.c.b16 %v1762, %v1761
    %v1824 = vpack.c.b16 %v1764, %v1763
    %v1825 = vpack.c.b16 %v1766, %v1765
    %v1826 = vpack.c.b16 %v1768, %v1767
    %v1827 = vpack.c.b16 %v1770, %v1769
    %v1828 = vpack.c.b16 %v1772, %v1771
    %v1829 = vpack.c.b16 %v1774, %v1773
    %v1830 = vpack.c.b16 %v1776, %v1775
    %v1831 = vpack.c.b16 %v1778, %v1777
    %v1832 = vpack.c.b16 %v1780, %v1779
    %v1833 = vpack.c.b16 %v1782, %v1781
    %v1834 = vpack.c.b16 %v1784, %v1783
    %v1835 = vpack.c.b16 %v1786, %v1785
    %v1836 = vpack.c.b16 %v1788, %v1787
    %v1837 = vpack.c.b16 %v1790, %v1789
    %v1838 = vpack.c.b16 %v1792, %v1791
    %v1839 = vpack.c.b16 %v1794, %v1793
    %v1840 = vpack.c.b16 %v1796, %v1795
    %v1841 = vpack.c.b16 %v1798, %v1797
    %v1842 = vpack.c.b16 %v1800, %v1799
    %v1843 = vpack.c.b16 %v1802, %v1801
    %v1844 = vpack.c.b16 %v1804, %v1803
    %v1845 = vpack.c.b16 %v1806, %v1805
    %v1846 = vpack.c.b16 %v1808, %v1807
    %v1847 = vpack.c.b16 %v1810, %v1809
    %v1848 = vpack.c.b16 %v1812, %v1811
    %v1849 = vpack.c.b16 %v1814, %v1813
    %v1850 = vpack.c.b16 %v1816, %v1815
    %v1851 = vpack.c.b16 %v1818, %v1817
    %v1852 = vpack.c.b16 %v1820, %v1819
    %1885 = vst [vmem:[#allocation9] sm:$0xff] %v1821
    %1886 = vst [vmem:[#allocation9 + $0x8] sm:$0xff] %v1822
    %1887 = vst [vmem:[#allocation9 + $0x10] sm:$0xff] %v1823
    %1888 = vst [vmem:[#allocation9 + $0x18] sm:$0xff] %v1824
    %1889 = vst [vmem:[#allocation9 + $0x20] sm:$0xff] %v1825
    %1890 = vst [vmem:[#allocation9 + $0x28] sm:$0xff] %v1826
    %1891 = vst [vmem:[#allocation9 + $0x30] sm:$0xff] %v1827
    %1892 = vst [vmem:[#allocation9 + $0x38] sm:$0xff] %v1828
    %1893 = vst [vmem:[#allocation9 + $0x40] sm:$0xff] %v1829
    %1894 = vst [vmem:[#allocation9 + $0x48] sm:$0xff] %v1830
    %1895 = vst [vmem:[#allocation9 + $0x50] sm:$0xff] %v1831
    %1896 = vst [vmem:[#allocation9 + $0x58] sm:$0xff] %v1832
    %1897 = vst [vmem:[#allocation9 + $0x60] sm:$0xff] %v1833
    %1898 = vst [vmem:[#allocation9 + $0x68] sm:$0xff] %v1834
    %1899 = vst [vmem:[#allocation9 + $0x70] sm:$0xff] %v1835
    %1900 = vst [vmem:[#allocation9 + $0x78] sm:$0xff] %v1836
    %1901 = vst [vmem:[#allocation9 + $0x80] sm:$0xff] %v1837
    %1902 = vst [vmem:[#allocation9 + $0x88] sm:$0xff] %v1838
    %1903 = vst [vmem:[#allocation9 + $0x90] sm:$0xff] %v1839
    %1904 = vst [vmem:[#allocation9 + $0x98] sm:$0xff] %v1840
    %1905 = vst [vmem:[#allocation9 + $0xa0] sm:$0xff] %v1841
    %1906 = vst [vmem:[#allocation9 + $0xa8] sm:$0xff] %v1842
    %1907 = vst [vmem:[#allocation9 + $0xb0] sm:$0xff] %v1843
    %1908 = vst [vmem:[#allocation9 + $0xb8] sm:$0xff] %v1844
    %1909 = vst [vmem:[#allocation9 + $0xc0] sm:$0xff] %v1845
    %1910 = vst [vmem:[#allocation9 + $0xc8] sm:$0xff] %v1846
    %1911 = vst [vmem:[#allocation9 + $0xd0] sm:$0xff] %v1847
    %1912 = vst [vmem:[#allocation9 + $0xd8] sm:$0xff] %v1848
    %1913 = vst [vmem:[#allocation9 + $0xe0] sm:$0xff] %v1849
    %1914 = vst [vmem:[#allocation9 + $0xe8] sm:$0xff] %v1850
    %1915 = vst [vmem:[#allocation9 + $0xf0] sm:$0xff] %v1851
    %1916 = vst [vmem:[#allocation9 + $0xf8] sm:$0xff] %v1852
    %v1949 = vunpack.c.l.b16 %v1441
    %v1950 = vunpack.c.l.b16 %v1442
    %v1951 = vunpack.c.h.b16 %v1441
    %v1952 = vunpack.c.h.b16 %v1442
    %v1953 = vunpack.c.l.b16 %v1447
    %v1954 = vunpack.c.l.b16 %v1448
    %v1955 = vunpack.c.h.b16 %v1447
    %v1956 = vunpack.c.h.b16 %v1448
    %v1957 = vunpack.c.l.b16 %v1453
    %v1958 = vunpack.c.l.b16 %v1454
    %v1959 = vunpack.c.h.b16 %v1453
    %v1960 = vunpack.c.h.b16 %v1454
    %v1961 = vunpack.c.l.b16 %v1459
    %v1962 = vunpack.c.l.b16 %v1460
    %v1963 = vunpack.c.h.b16 %v1459
    %v1964 = vunpack.c.h.b16 %v1460
    %v1965 = vunpack.c.l.b16 %v1465
    %v1966 = vunpack.c.l.b16 %v1466
    %v1967 = vunpack.c.h.b16 %v1465
    %v1968 = vunpack.c.h.b16 %v1466
    %v1969 = vunpack.c.l.b16 %v1471
    %v1970 = vunpack.c.l.b16 %v1472
    %v1971 = vunpack.c.h.b16 %v1471
    %v1972 = vunpack.c.h.b16 %v1472
    %v1973 = vunpack.c.l.b16 %v1477
    %v1974 = vunpack.c.l.b16 %v1478
    %v1975 = vunpack.c.h.b16 %v1477
    %v1976 = vunpack.c.h.b16 %v1478
    %v1977 = vunpack.c.l.b16 %v1483
    %v1978 = vunpack.c.l.b16 %v1484
    %v1979 = vunpack.c.h.b16 %v1483
    %v1980 = vunpack.c.h.b16 %v1484
    %v1981 = vunpack.c.l.b16 %v1489
    %v1982 = vunpack.c.l.b16 %v1490
    %v1983 = vunpack.c.h.b16 %v1489
    %v1984 = vunpack.c.h.b16 %v1490
    %v1985 = vunpack.c.l.b16 %v1495
    %v1986 = vunpack.c.l.b16 %v1496
    %v1987 = vunpack.c.h.b16 %v1495
    %v1988 = vunpack.c.h.b16 %v1496
    %v1989 = vunpack.c.l.b16 %v1501
    %v1990 = vunpack.c.l.b16 %v1502
    %v1991 = vunpack.c.h.b16 %v1501
    %v1992 = vunpack.c.h.b16 %v1502
    %v1993 = vunpack.c.l.b16 %v1507
    %v1994 = vunpack.c.l.b16 %v1508
    %v1995 = vunpack.c.h.b16 %v1507
    %v1996 = vunpack.c.h.b16 %v1508
    %v1997 = vunpack.c.l.b16 %v1513
    %v1998 = vunpack.c.l.b16 %v1514
    %v1999 = vunpack.c.h.b16 %v1513
    %v2000 = vunpack.c.h.b16 %v1514
    %v2001 = vunpack.c.l.b16 %v1519
    %v2002 = vunpack.c.l.b16 %v1520
    %v2003 = vunpack.c.h.b16 %v1519
    %v2004 = vunpack.c.h.b16 %v1520
    %v2005 = vunpack.c.l.b16 %v1525
    %v2006 = vunpack.c.l.b16 %v1526
    %v2007 = vunpack.c.h.b16 %v1525
    %v2008 = vunpack.c.h.b16 %v1526
    %v2009 = vunpack.c.l.b16 %v1531
    %v2010 = vunpack.c.l.b16 %v1532
    %v2011 = vunpack.c.h.b16 %v1531
    %v2012 = vunpack.c.h.b16 %v1532
    %v2013 = vpack.c.b16 %v1950, %v1949
    %v2014 = vpack.c.b16 %v1952, %v1951
    %v2015 = vpack.c.b16 %v1954, %v1953
    %v2016 = vpack.c.b16 %v1956, %v1955
    %v2017 = vpack.c.b16 %v1958, %v1957
    %v2018 = vpack.c.b16 %v1960, %v1959
    %v2019 = vpack.c.b16 %v1962, %v1961
    %v2020 = vpack.c.b16 %v1964, %v1963
    %v2021 = vpack.c.b16 %v1966, %v1965
    %v2022 = vpack.c.b16 %v1968, %v1967
    %v2023 = vpack.c.b16 %v1970, %v1969
    %v2024 = vpack.c.b16 %v1972, %v1971
    %v2025 = vpack.c.b16 %v1974, %v1973
    %v2026 = vpack.c.b16 %v1976, %v1975
    %v2027 = vpack.c.b16 %v1978, %v1977
    %v2028 = vpack.c.b16 %v1980, %v1979
    %v2029 = vpack.c.b16 %v1982, %v1981
    %v2030 = vpack.c.b16 %v1984, %v1983
    %v2031 = vpack.c.b16 %v1986, %v1985
    %v2032 = vpack.c.b16 %v1988, %v1987
    %v2033 = vpack.c.b16 %v1990, %v1989
    %v2034 = vpack.c.b16 %v1992, %v1991
    %v2035 = vpack.c.b16 %v1994, %v1993
    %v2036 = vpack.c.b16 %v1996, %v1995
    %v2037 = vpack.c.b16 %v1998, %v1997
    %v2038 = vpack.c.b16 %v2000, %v1999
    %v2039 = vpack.c.b16 %v2002, %v2001
    %v2040 = vpack.c.b16 %v2004, %v2003
    %v2041 = vpack.c.b16 %v2006, %v2005
    %v2042 = vpack.c.b16 %v2008, %v2007
    %v2043 = vpack.c.b16 %v2010, %v2009
    %v2044 = vpack.c.b16 %v2012, %v2011
    %2077 = vst [vmem:[#allocation11] sm:$0xff] %v2013
    %2078 = vst [vmem:[#allocation11 + $0x8] sm:$0xff] %v2014
    %2079 = vst [vmem:[#allocation11 + $0x10] sm:$0xff] %v2015
    %2080 = vst [vmem:[#allocation11 + $0x18] sm:$0xff] %v2016
    %2081 = vst [vmem:[#allocation11 + $0x20] sm:$0xff] %v2017
    %2082 = vst [vmem:[#allocation11 + $0x28] sm:$0xff] %v2018
    %2083 = vst [vmem:[#allocation11 + $0x30] sm:$0xff] %v2019
    %2084 = vst [vmem:[#allocation11 + $0x38] sm:$0xff] %v2020
    %2085 = vst [vmem:[#allocation11 + $0x40] sm:$0xff] %v2021
    %2086 = vst [vmem:[#allocation11 + $0x48] sm:$0xff] %v2022
    %2087 = vst [vmem:[#allocation11 + $0x50] sm:$0xff] %v2023
    %2088 = vst [vmem:[#allocation11 + $0x58] sm:$0xff] %v2024
    %2089 = vst [vmem:[#allocation11 + $0x60] sm:$0xff] %v2025
    %2090 = vst [vmem:[#allocation11 + $0x68] sm:$0xff] %v2026
    %2091 = vst [vmem:[#allocation11 + $0x70] sm:$0xff] %v2027
    %2092 = vst [vmem:[#allocation11 + $0x78] sm:$0xff] %v2028
    %2093 = vst [vmem:[#allocation11 + $0x80] sm:$0xff] %v2029
    %2094 = vst [vmem:[#allocation11 + $0x88] sm:$0xff] %v2030
    %2095 = vst [vmem:[#allocation11 + $0x90] sm:$0xff] %v2031
    %2096 = vst [vmem:[#allocation11 + $0x98] sm:$0xff] %v2032
    %2097 = vst [vmem:[#allocation11 + $0xa0] sm:$0xff] %v2033
    %2098 = vst [vmem:[#allocation11 + $0xa8] sm:$0xff] %v2034
    %2099 = vst [vmem:[#allocation11 + $0xb0] sm:$0xff] %v2035
    %2100 = vst [vmem:[#allocation11 + $0xb8] sm:$0xff] %v2036
    %2101 = vst [vmem:[#allocation11 + $0xc0] sm:$0xff] %v2037
    %2102 = vst [vmem:[#allocation11 + $0xc8] sm:$0xff] %v2038
    %2103 = vst [vmem:[#allocation11 + $0xd0] sm:$0xff] %v2039
    %2104 = vst [vmem:[#allocation11 + $0xd8] sm:$0xff] %v2040
    %2105 = vst [vmem:[#allocation11 + $0xe0] sm:$0xff] %v2041
    %2106 = vst [vmem:[#allocation11 + $0xe8] sm:$0xff] %v2042
    %2107 = vst [vmem:[#allocation11 + $0xf0] sm:$0xff] %v2043
    %2108 = vst [vmem:[#allocation11 + $0xf8] sm:$0xff] %v2044
    // Predicated region
    $region26: #{tpu_custom_call.1} parent=1 // pred_check
      _
    $region27: #{tpu_custom_call.1} parent=1 // pred_check_branch
      %2110 = sbr.rel (0) target = $region29
    $region28: #{tpu_custom_call.1} parent=1 // pred_region
      %s2112 = ssub.s32 4096, 4096
      %2113 = vsyncadd [#allocation4], %s2112
      %s2114 = sshll.u32 [#allocation8], 4
      %s2115 = int_to_ptr.vmem [resolvable:$true] %s2114
      %2120 = dma.vmem_to_hbm [thread:$0]  %s2115, 4096, %s3, [#allocation4], 128, 128, 8
    $region29: #{tpu_custom_call.1} parent=1 // pred_fallthru
      _
    // Predicated region
    $region30: #{tpu_custom_call.1} parent=1 // pred_check
      _
    $region31: #{tpu_custom_call.1} parent=1 // pred_check_branch
      %2122 = sbr.rel (0) target = $region33
    $region32: #{tpu_custom_call.1} parent=1 // pred_region
      %s2124 = ssub.s32 4096, 4096
      %2125 = vsyncadd [#allocation10], %s2124
      %s2126 = sshll.u32 [#allocation9], 4
      %s2127 = int_to_ptr.vmem [resolvable:$true] %s2126
      %2132 = dma.vmem_to_hbm [thread:$0]  %s2127, 4096, %s4, [#allocation10], 128, 128, 8
    $region33: #{tpu_custom_call.1} parent=1 // pred_fallthru
      _
    // Predicated region
    $region34: #{tpu_custom_call.1} parent=1 // pred_check
      _
    $region35: #{tpu_custom_call.1} parent=1 // pred_check_branch
      %2134 = sbr.rel (0) target = $region37
    $region36: #{tpu_custom_call.1} parent=1 // pred_region
      %s2136 = ssub.s32 4096, 4096
      %2137 = vsyncadd [#allocation10], %s2136
      %s2138 = sshll.u32 [#allocation11], 4
      %s2139 = int_to_ptr.vmem [resolvable:$true] %s2138
      %2144 = dma.vmem_to_hbm [thread:$0]  %s2139, 4096, %s5, [#allocation10], 128, 128, 8
    $region37: #{tpu_custom_call.1} parent=1 // pred_fallthru
      _
    // Predicated region
    $region38: #{tpu_custom_call.1} parent=1 // pred_check
      _
    $region39: #{tpu_custom_call.1} parent=1 // pred_check_branch
      %2146 = sbr.rel (0) target = $region41
    $region40: #{tpu_custom_call.1} parent=1 // pred_region
      %2147 = dma.done [#allocation4], 4096
    $region41: #{tpu_custom_call.1} parent=1 // pred_fallthru
      _
    // Predicated region
    $region42: #{tpu_custom_call.1} parent=1 // pred_check
      _
    $region43: #{tpu_custom_call.1} parent=1 // pred_check_branch
      %2149 = sbr.rel (0) target = $region45
    $region44: #{tpu_custom_call.1} parent=1 // pred_region
      %2150 = dma.done [#allocation10], 4096
    $region45: #{tpu_custom_call.1} parent=1 // pred_fallthru
      _
    // Predicated region
    $region46: #{tpu_custom_call.1} parent=1 // pred_check
      _
    $region47: #{tpu_custom_call.1} parent=1 // pred_check_branch
      %2152 = sbr.rel (0) target = $region49
    $region48: #{tpu_custom_call.1} parent=1 // pred_region
      %2153 = dma.done [#allocation10], 4096
    $region49: #{tpu_custom_call.1} parent=1 // pred_fallthru
      _
    %2154 = vsyncpa [#allocation3], 1
    %2155 = vsyncpa [#allocation6], 1
    %2156 = vsyncpa [#allocation4], 1
    %2157 = vsyncpa [#allocation10], 1

</llo_original>
